<compile_context>
chip_gen: v7x
topology: tpu7x:2x2x1
jax: 0.10.0
libtpu: 0.0.40
codegen_flags: <defaults>
</compile_context>

<pallas_src>
import functools
import math

import jax
import jax.numpy as jnp
from jax.experimental import pallas as pl
from jax.experimental.pallas import tpu as pltpu


# ----------------------------------------------------------------------------
# Kernel
# ----------------------------------------------------------------------------
def _optimizer_kernel(preproc, preproc_factor, hidden_sz, hidden_pad,
                      # streamed inputs (N on the lane axis)
                      g_ref, h0_ref, c0_ref, h1_ref, c1_ref,
                      # resident weights (gate rows padded to Hp)
                      wih1a_ref, wih1b_ref, whh1_ref, b1_ref,
                      wih2_ref, whh2_ref, b2_ref,
                      wout_ref, bout_ref,
                      # streamed outputs
                      out_ref, h0o_ref, c0o_ref, h1o_ref, c1o_ref):
    H = hidden_sz
    Hp = hidden_pad
    g = g_ref[...]                                  # (1, T) raw gradients

    # ---- optional gradient preprocessing (Andrychowicz et al.) --------------
    # Input projection has a contraction dim of only 1 or 2, so it is done as a
    # VPU broadcast-multiply (no degenerate MXU matmul).
    wa = wih1a_ref[...]                             # (4Hp, 1) column 0 of W_ih1
    if preproc:
        thr = jnp.float32(math.exp(-preproc_factor))
        absg = jnp.abs(g)
        keep = absg >= thr
        col0 = jnp.where(keep,
                         jnp.log(absg + 1e-8) / jnp.float32(preproc_factor),
                         jnp.float32(-1.0))
        col1 = jnp.where(keep, jnp.sign(g),
                         jnp.float32(math.exp(preproc_factor)) * g)
        gates1 = wa * col0 + wih1b_ref[...] * col1  # (4Hp, T)
    else:
        gates1 = wa * g                             # (4Hp, T)

    h0 = h0_ref[...]                                # (H, T)
    c0 = c0_ref[...]
    h1 = h1_ref[...]
    c1 = c1_ref[...]

    # LSTM cell 1: hidden projection on the MXU (gates = W @ h, lane-dense).
    gates1 = gates1 + jnp.dot(whh1_ref[...], h0,
                              preferred_element_type=jnp.float32)
    gates1 = gates1 + b1_ref[...]                   # (4Hp, 1) broadcast over lanes

    def sigmoid(x):
        # Single EUP transcendental per element (tanh) instead of exp + recip.
        return 0.5 * jnp.tanh(0.5 * x) + 0.5

    def lstm_from_gates(gates, c):
        # Gate blocks start at multiples of Hp (8-sublane aligned) — the slices
        # are tile-aligned sublane views, no relayout copies.
        i = sigmoid(gates[0 * Hp:0 * Hp + H, :])
        f = sigmoid(gates[1 * Hp:1 * Hp + H, :])
        g_ = jnp.tanh(gates[2 * Hp:2 * Hp + H, :])
        o = sigmoid(gates[3 * Hp:3 * Hp + H, :])
        c_new = f * c + i * g_
        h_new = o * jnp.tanh(c_new)
        return h_new, c_new

    h0n, c0n = lstm_from_gates(gates1, c0)

    # LSTM cell 2 (H -> H). Two K=20 MXU dots; MXU is <<1% utilized here so an
    # activation concat to fuse them would only add an in-kernel relayout.
    gates2 = (jnp.dot(wih2_ref[...], h0n, preferred_element_type=jnp.float32)
              + jnp.dot(whh2_ref[...], h1, preferred_element_type=jnp.float32)
              + b2_ref[...])
    h1n, c1n = lstm_from_gates(gates2, c1)

    # Output linear layer (H -> 1): VPU broadcast-multiply + XLU sublane
    # reduction instead of a 1-column MXU matmul/drain.
    out = jnp.sum(h1n * wout_ref[...], axis=0, keepdims=True) + bout_ref[...]

    out_ref[...] = out
    h0o_ref[...] = h0n
    c0o_ref[...] = c0n
    h1o_ref[...] = h1n
    c1o_ref[...] = c1n


# ----------------------------------------------------------------------------
# Wrapper helpers
# ----------------------------------------------------------------------------
def _choose_tile(n, tile_n):
    """Pick the lane-tile size. N is padded UP to a multiple of the tile by the
    caller, so no divisibility constraint (removes the old tile=128 fallback)."""
    t = max(128, (int(tile_n) // 128) * 128)
    n128 = -(-n // 128) * 128
    if n128 <= t:
        return n128                     # single step covers everything
    if n128 < 2 * t:
        # Keep >= 2 grid steps so both v7x TensorCores get work; each half is
        # still >= tile_n/2, so the extra per-step overhead on 1-TC chips is
        # negligible.
        t = -(-(n128 // 2) // 128) * 128
    return t


def _pad_gate_blocks(w, H, Hp):
    """(4H, K) -> (4Hp, K): zero-pad each of the 4 gate blocks to Hp rows so
    gate splits inside the kernel start on 8-sublane boundaries."""
    if Hp == H:
        return w
    pad_rows = Hp - H
    pad_cfg = ((0, pad_rows),) + ((0, 0),) * (w.ndim - 1)
    blocks = [jnp.pad(w[g * H:(g + 1) * H], pad_cfg) for g in range(4)]
    return jnp.concatenate(blocks, axis=0)


# ----------------------------------------------------------------------------
# Wrapper
# ----------------------------------------------------------------------------
def optimizer_forward(grad, hidden, cell, params, *, preproc=False,
                      preproc_factor=10.0, hidden_sz=20, tile_n=4096):
    """Pallas equivalent of Optimizer.forward in lane-dense (transposed) layout.

    grad:   (1, N) or (N,) float32 gradients  (N = number of optimizee params)
    hidden: tuple of two (H, N) float32
    cell:   tuple of two (H, N) float32
    returns (update (1, N), (h0', h1'), (c0', c1'))
    """
    H = hidden_sz
    Hp = ((H + 7) // 8) * 8            # gate-block rows, 8-sublane aligned
    grad = grad.reshape(1, -1).astype(jnp.float32)
    n_orig = grad.shape[1]

    tile = _choose_tile(n_orig, tile_n)
    n_total = -(-n_orig // tile) * tile
    pad = n_total - n_orig

    hidden = tuple(h.astype(jnp.float32) for h in hidden)
    cell = tuple(c.astype(jnp.float32) for c in cell)
    if pad:
        grad = jnp.pad(grad, ((0, 0), (0, pad)))
        hidden = tuple(jnp.pad(h, ((0, 0), (0, pad))) for h in hidden)
        cell = tuple(jnp.pad(c, ((0, 0), (0, pad))) for c in cell)
    N = n_total

    # Torch-convention weights are already in "gates = W @ x" orientation for
    # the transposed layout; fuse the two bias vectors, split W_ih1 per column,
    # pad every gate block to Hp rows.
    w_ih1 = params["w_ih1"].astype(jnp.float32)                    # (4H, in_dim)
    wih1_a = _pad_gate_blocks(w_ih1[:, 0:1], H, Hp)
    wih1_b = (_pad_gate_blocks(w_ih1[:, 1:2], H, Hp) if preproc
              else jnp.zeros((4 * Hp, 1), jnp.float32))            # unused if !preproc
    whh1 = _pad_gate_blocks(params["w_hh1"].astype(jnp.float32), H, Hp)
    b1 = _pad_gate_blocks(
        (params["b_ih1"] + params["b_hh1"]).reshape(4 * H, 1).astype(jnp.float32),
        H, Hp)
    wih2 = _pad_gate_blocks(params["w_ih2"].astype(jnp.float32), H, Hp)
    whh2 = _pad_gate_blocks(params["w_hh2"].astype(jnp.float32), H, Hp)
    b2 = _pad_gate_blocks(
        (params["b_ih2"] + params["b_hh2"]).reshape(4 * H, 1).astype(jnp.float32),
        H, Hp)
    wout = params["w_out"].reshape(H, 1).astype(jnp.float32)       # (H, 1)
    bout = params["b_out"].reshape(1, 1).astype(jnp.float32)       # (1, 1)

    grid = (N // tile,)

    def rows(r):
        return pl.BlockSpec((r, tile), lambda i: (0, i))

    def whole(shape):
        return pl.BlockSpec(shape, lambda i: (0, 0))

    kernel = functools.partial(_optimizer_kernel, preproc,
                               float(preproc_factor), H, Hp)

    # Explicit VMEM budget so large tiles also compile on v5e (16 MiB default
    # scoped VMEM): streamed blocks (sublane-padded, double-buffered) + temps.
    rows_stream = 8 + 4 * Hp                               # grad + 4 state rows
    stream_bytes = 2 * 2 * rows_stream * tile * 4          # in + out, 2 buffers
    temp_bytes = (2 * 4 * Hp + 8 * H) * tile * 4           # gates + activations
    vmem_limit = int(min(64 * 1024 * 1024,
                         max(32 * 1024 * 1024,
                             1.5 * (stream_bytes + temp_bytes))))

    out_shapes = (
        jax.ShapeDtypeStruct((1, N), jnp.float32),   # update
        jax.ShapeDtypeStruct((H, N), jnp.float32),   # hidden0'
        jax.ShapeDtypeStruct((H, N), jnp.float32),   # cell0'
        jax.ShapeDtypeStruct((H, N), jnp.float32),   # hidden1'
        jax.ShapeDtypeStruct((H, N), jnp.float32),   # cell1'
    )

    upd, h0n, c0n, h1n, c1n = pl.pallas_call(
        kernel,
        out_shape=out_shapes,
        grid_spec=pltpu.PrefetchScalarGridSpec(
            num_scalar_prefetch=0,
            grid=grid,
            in_specs=[
                rows(1),                     # grad
                rows(H), rows(H),            # hidden0, cell0
                rows(H), rows(H),            # hidden1, cell1
                whole((4 * Hp, 1)), whole((4 * Hp, 1)),        # W_ih1 columns
                whole((4 * Hp, H)), whole((4 * Hp, 1)),        # W_hh1, b1
                whole((4 * Hp, H)), whole((4 * Hp, H)), whole((4 * Hp, 1)),
                whole((H, 1)), whole((1, 1)),                  # W_out, b_out
            ],
            out_specs=[rows(1), rows(H), rows(H), rows(H), rows(H)],
        ),
        compiler_params=pltpu.CompilerParams(
            dimension_semantics=("parallel",),
            vmem_limit_bytes=vmem_limit),
    )(grad, hidden[0], cell[0], hidden[1], cell[1],
      wih1_a, wih1_b, whh1, b1, wih2, whh2, b2, wout, bout)

    if pad:
        upd = upd[:, :n_orig]
        h0n, c0n = h0n[:, :n_orig], c0n[:, :n_orig]
        h1n, c1n = h1n[:, :n_orig], c1n[:, :n_orig]
    return upd, (h0n, h1n), (c0n, c1n)


# ----------------------------------------------------------------------------
# Pure-JAX reference (mirrors torch.nn.LSTMCell / Linear semantics exactly,
# expressed in the same transposed layout)
# ----------------------------------------------------------------------------
def optimizer_forward_ref(grad, hidden, cell, params, *, preproc=False,
                          preproc_factor=10.0, hidden_sz=20):
    H = hidden_sz
    x = grad.reshape(1, -1)
    if preproc:
        thr = math.exp(-preproc_factor)
        absg = jnp.abs(x)
        keep = absg >= thr
        col0 = jnp.where(keep, jnp.log(absg + 1e-8) / preproc_factor, -1.0)
        col1 = jnp.where(keep, jnp.sign(x), math.exp(preproc_factor) * x)
        x = jnp.concatenate([col0, col1], axis=0)        # (2, N)

    def lstm_cell(xin, h, c, wih, whh, bih, bhh):
        gates = wih @ xin + bih[:, None] + whh @ h + bhh[:, None]   # (4H, N)
        i = jax.nn.sigmoid(gates[0:H])
        f = jax.nn.sigmoid(gates[H:2 * H])
        g_ = jnp.tanh(gates[2 * H:3 * H])
        o = jax.nn.sigmoid(gates[3 * H:4 * H])
        c_new = f * c + i * g_
        h_new = o * jnp.tanh(c_new)
        return h_new, c_new

    h0n, c0n = lstm_cell(x, hidden[0], cell[0],
                         params["w_ih1"], params["w_hh1"],
                         params["b_ih1"], params["b_hh1"])
    h1n, c1n = lstm_cell(h0n, hidden[1], cell[1],
                         params["w_ih2"], params["w_hh2"],
                         params["b_ih2"], params["b_hh2"])
    out = params["w_out"] @ h1n + params["b_out"][:, None]           # (1, N)
    return out, (h0n, h1n), (c0n, c1n)


# ----------------------------------------------------------------------------
# Deterministic parameter init (torch default: U(-1/sqrt(H), 1/sqrt(H)))
# ----------------------------------------------------------------------------
def init_params(key, hidden_sz, preproc):
    H = hidden_sz
    in_dim = 2 if preproc else 1
    bound = 1.0 / math.sqrt(H)
    ks = jax.random.split(key, 10)
    u = lambda k, shape: jax.random.uniform(
        k, shape, jnp.float32, minval=-bound, maxval=bound)
    return {
        "w_ih1": u(ks[0], (4 * H, in_dim)),
        "w_hh1": u(ks[1], (4 * H, H)),
        "b_ih1": u(ks[2], (4 * H,)),
        "b_hh1": u(ks[3], (4 * H,)),
        "w_ih2": u(ks[4], (4 * H, H)),
        "w_hh2": u(ks[5], (4 * H, H)),
        "b_ih2": u(ks[6], (4 * H,)),
        "b_hh2": u(ks[7], (4 * H,)),
        "w_out": u(ks[8], (1, H)),
        "b_out": u(ks[9], (1,)),
    }


# ----------------------------------------------------------------------------
if __name__ == "__main__":
    import numpy as np

    N = 500          # number of optimizee parameters (non-multiple of 128 to
                     # exercise the padding path); small test size
    H = 20           # hidden_sz (module default)
    key = jax.random.PRNGKey(0)
    k_inp, k_h0, k_h1, k_c0, k_c1, k_msk, k_par = jax.random.split(key, 7)

    # gradients: mix of large and tiny magnitudes so both preproc branches run
    grad = jax.random.normal(k_inp, (1, N), jnp.float32) * \
        jnp.where(jax.random.uniform(k_msk, (1, N)) > 0.5, 1.0, 1e-6)
    hidden = (0.1 * jax.random.normal(k_h0, (H, N), jnp.float32),
              0.1 * jax.random.normal(k_h1, (H, N), jnp.float32))
    cell = (0.1 * jax.random.normal(k_c0, (H, N), jnp.float32),
            0.1 * jax.random.normal(k_c1, (H, N), jnp.float32))

    # tile_n=256 exercises the multi-step (grid>=2) padded path; the default
    # tile (4096) exercises the single-block path.
    for preproc in (False, True):
        params = init_params(k_par, H, preproc)
        ro, (rh0, rh1), (rc0, rc1) = optimizer_forward_ref(
            grad, hidden, cell, params, preproc=preproc,
            preproc_factor=10.0, hidden_sz=H)

        for tile_n in (256, 4096):
            out, (h0n, h1n), (c0n, c1n) = optimizer_forward(
                grad, hidden, cell, params, preproc=preproc,
                preproc_factor=10.0, hidden_sz=H, tile_n=tile_n)
            jax.block_until_ready(out)

            for a, b in ((out, ro), (h0n, rh0), (h1n, rh1),
                         (c0n, rc0), (c1n, rc1)):
                np.testing.assert_allclose(np.asarray(a), np.asarray(b),
                                           rtol=1e-5, atol=1e-5)

    print("KERNEL_OK")
</pallas_src>

<mosaic_0001>
module attributes {stable_mosaic.version = 11 : i64} {
  func.func @_optimizer_kernel(%arg0: i32, %arg1: memref<1x256xf32, #tpu.memory_space<vmem>>, %arg2: memref<20x256xf32, #tpu.memory_space<vmem>>, %arg3: memref<20x256xf32, #tpu.memory_space<vmem>>, %arg4: memref<20x256xf32, #tpu.memory_space<vmem>>, %arg5: memref<20x256xf32, #tpu.memory_space<vmem>>, %arg6: memref<96x1xf32, #tpu.memory_space<vmem>>, %arg7: memref<96x1xf32, #tpu.memory_space<vmem>>, %arg8: memref<96x20xf32, #tpu.memory_space<vmem>>, %arg9: memref<96x1xf32, #tpu.memory_space<vmem>>, %arg10: memref<96x20xf32, #tpu.memory_space<vmem>>, %arg11: memref<96x20xf32, #tpu.memory_space<vmem>>, %arg12: memref<96x1xf32, #tpu.memory_space<vmem>>, %arg13: memref<20x1xf32, #tpu.memory_space<vmem>>, %arg14: memref<1x1xf32, #tpu.memory_space<vmem>>, %arg15: memref<1x256xf32, #tpu.memory_space<vmem>>, %arg16: memref<20x256xf32, #tpu.memory_space<vmem>>, %arg17: memref<20x256xf32, #tpu.memory_space<vmem>>, %arg18: memref<20x256xf32, #tpu.memory_space<vmem>>, %arg19: memref<20x256xf32, #tpu.memory_space<vmem>>) attributes {dimension_semantics = [#tpu.dimension_semantics<parallel>], iteration_bounds = array<i64: 2>, scalar_prefetch = 0 : i64, scratch_operands = 0 : i64, tpu.core_type = #tpu.core_type<tc>, window_params = [{transform_indices = @transform_0, window_bounds = array<i64: 1, 256>}, {transform_indices = @transform_1, window_bounds = array<i64: 20, 256>}, {transform_indices = @transform_2, window_bounds = array<i64: 20, 256>}, {transform_indices = @transform_3, window_bounds = array<i64: 20, 256>}, {transform_indices = @transform_4, window_bounds = array<i64: 20, 256>}, {pipeline_mode = #tpu.pipeline_mode<synchronous>, transform_indices = @transform_5, window_bounds = array<i64: 96, 1>}, {pipeline_mode = #tpu.pipeline_mode<synchronous>, transform_indices = @transform_6, window_bounds = array<i64: 96, 1>}, {pipeline_mode = #tpu.pipeline_mode<synchronous>, transform_indices = @transform_7, window_bounds = array<i64: 96, 20>}, {pipeline_mode = #tpu.pipeline_mode<synchronous>, transform_indices = @transform_8, window_bounds = array<i64: 96, 1>}, {pipeline_mode = #tpu.pipeline_mode<synchronous>, transform_indices = @transform_9, window_bounds = array<i64: 96, 20>}, {pipeline_mode = #tpu.pipeline_mode<synchronous>, transform_indices = @transform_10, window_bounds = array<i64: 96, 20>}, {pipeline_mode = #tpu.pipeline_mode<synchronous>, transform_indices = @transform_11, window_bounds = array<i64: 96, 1>}, {pipeline_mode = #tpu.pipeline_mode<synchronous>, transform_indices = @transform_12, window_bounds = array<i64: 20, 1>}, {pipeline_mode = #tpu.pipeline_mode<synchronous>, transform_indices = @transform_13, window_bounds = array<i64: 1, 1>}, {transform_indices = @transform_14, window_bounds = array<i64: 1, 256>}, {transform_indices = @transform_15, window_bounds = array<i64: 20, 256>}, {transform_indices = @transform_16, window_bounds = array<i64: 20, 256>}, {transform_indices = @transform_17, window_bounds = array<i64: 20, 256>}, {transform_indices = @transform_18, window_bounds = array<i64: 20, 256>}]} {
    %c0 = arith.constant 0 : index
    %c0_0 = arith.constant 0 : index
    %0 = vector.load %arg1[%c0, %c0_0] : memref<1x256xf32, #tpu.memory_space<vmem>>, vector<1x256xf32>
    %c0_1 = arith.constant 0 : index
    %c0_2 = arith.constant 0 : index
    %1 = vector.load %arg6[%c0_1, %c0_2] : memref<96x1xf32, #tpu.memory_space<vmem>>, vector<96x1xf32>
    %2 = vector.broadcast %1 : vector<96x1xf32> to vector<96x256xf32>
    %3 = vector.broadcast %0 : vector<1x256xf32> to vector<96x256xf32>
    %4 = arith.mulf %2, %3 : vector<96x256xf32>
    %c0_3 = arith.constant 0 : index
    %c0_4 = arith.constant 0 : index
    %5 = vector.load %arg2[%c0_3, %c0_4] : memref<20x256xf32, #tpu.memory_space<vmem>>, vector<20x256xf32>
    %c0_5 = arith.constant 0 : index
    %c0_6 = arith.constant 0 : index
    %6 = vector.load %arg3[%c0_5, %c0_6] : memref<20x256xf32, #tpu.memory_space<vmem>>, vector<20x256xf32>
    %c0_7 = arith.constant 0 : index
    %c0_8 = arith.constant 0 : index
    %7 = vector.load %arg4[%c0_7, %c0_8] : memref<20x256xf32, #tpu.memory_space<vmem>>, vector<20x256xf32>
    %c0_9 = arith.constant 0 : index
    %c0_10 = arith.constant 0 : index
    %8 = vector.load %arg5[%c0_9, %c0_10] : memref<20x256xf32, #tpu.memory_space<vmem>>, vector<20x256xf32>
    %c0_11 = arith.constant 0 : index
    %c0_12 = arith.constant 0 : index
    %9 = vector.load %arg8[%c0_11, %c0_12] : memref<96x20xf32, #tpu.memory_space<vmem>>, vector<96x20xf32>
    %cst = arith.constant dense<0.000000e+00> : vector<96x256xf32>
    %10 = tpu.matmul %9, %5, %cst {dimension_numbers = #tpu.dot_dimension_numbers<[1], [0], [0], [1], [0, 0, 1, 1], [], []>} : vector<96x20xf32>, vector<20x256xf32>, vector<96x256xf32> -> vector<96x256xf32>
    %11 = arith.addf %4, %10 : vector<96x256xf32>
    %c0_13 = arith.constant 0 : index
    %c0_14 = arith.constant 0 : index
    %12 = vector.load %arg9[%c0_13, %c0_14] : memref<96x1xf32, #tpu.memory_space<vmem>>, vector<96x1xf32>
    %13 = vector.broadcast %12 : vector<96x1xf32> to vector<96x256xf32>
    %14 = arith.addf %11, %13 : vector<96x256xf32>
    %15 = vector.extract_strided_slice %14 {offsets = [0, 0], sizes = [20, 256], strides = [1, 1]} : vector<96x256xf32> to vector<20x256xf32>
    %cst_15 = arith.constant 5.000000e-01 : f32
    %16 = vector.broadcast %cst_15 : f32 to vector<20x256xf32>
    %17 = arith.mulf %16, %15 : vector<20x256xf32>
    %18 = math.tanh %17 : vector<20x256xf32>
    %cst_16 = arith.constant 5.000000e-01 : f32
    %19 = vector.broadcast %cst_16 : f32 to vector<20x256xf32>
    %20 = arith.mulf %19, %18 : vector<20x256xf32>
    %cst_17 = arith.constant 5.000000e-01 : f32
    %21 = vector.broadcast %cst_17 : f32 to vector<20x256xf32>
    %22 = arith.addf %20, %21 : vector<20x256xf32>
    %23 = vector.extract_strided_slice %14 {offsets = [24, 0], sizes = [20, 256], strides = [1, 1]} : vector<96x256xf32> to vector<20x256xf32>
    %cst_18 = arith.constant 5.000000e-01 : f32
    %24 = vector.broadcast %cst_18 : f32 to vector<20x256xf32>
    %25 = arith.mulf %24, %23 : vector<20x256xf32>
    %26 = math.tanh %25 : vector<20x256xf32>
    %cst_19 = arith.constant 5.000000e-01 : f32
    %27 = vector.broadcast %cst_19 : f32 to vector<20x256xf32>
    %28 = arith.mulf %27, %26 : vector<20x256xf32>
    %cst_20 = arith.constant 5.000000e-01 : f32
    %29 = vector.broadcast %cst_20 : f32 to vector<20x256xf32>
    %30 = arith.addf %28, %29 : vector<20x256xf32>
    %31 = vector.extract_strided_slice %14 {offsets = [48, 0], sizes = [20, 256], strides = [1, 1]} : vector<96x256xf32> to vector<20x256xf32>
    %32 = math.tanh %31 : vector<20x256xf32>
    %33 = vector.extract_strided_slice %14 {offsets = [72, 0], sizes = [20, 256], strides = [1, 1]} : vector<96x256xf32> to vector<20x256xf32>
    %cst_21 = arith.constant 5.000000e-01 : f32
    %34 = vector.broadcast %cst_21 : f32 to vector<20x256xf32>
    %35 = arith.mulf %34, %33 : vector<20x256xf32>
    %36 = math.tanh %35 : vector<20x256xf32>
    %cst_22 = arith.constant 5.000000e-01 : f32
    %37 = vector.broadcast %cst_22 : f32 to vector<20x256xf32>
    %38 = arith.mulf %37, %36 : vector<20x256xf32>
    %cst_23 = arith.constant 5.000000e-01 : f32
    %39 = vector.broadcast %cst_23 : f32 to vector<20x256xf32>
    %40 = arith.addf %38, %39 : vector<20x256xf32>
    %41 = arith.mulf %30, %6 : vector<20x256xf32>
    %42 = arith.mulf %22, %32 : vector<20x256xf32>
    %43 = arith.addf %41, %42 : vector<20x256xf32>
    %44 = math.tanh %43 : vector<20x256xf32>
    %45 = arith.mulf %40, %44 : vector<20x256xf32>
    %c0_24 = arith.constant 0 : index
    %c0_25 = arith.constant 0 : index
    %46 = vector.load %arg10[%c0_24, %c0_25] : memref<96x20xf32, #tpu.memory_space<vmem>>, vector<96x20xf32>
    %cst_26 = arith.constant dense<0.000000e+00> : vector<96x256xf32>
    %47 = tpu.matmul %46, %45, %cst_26 {dimension_numbers = #tpu.dot_dimension_numbers<[1], [0], [0], [1], [0, 0, 1, 1], [], []>} : vector<96x20xf32>, vector<20x256xf32>, vector<96x256xf32> -> vector<96x256xf32>
    %c0_27 = arith.constant 0 : index
    %c0_28 = arith.constant 0 : index
    %48 = vector.load %arg11[%c0_27, %c0_28] : memref<96x20xf32, #tpu.memory_space<vmem>>, vector<96x20xf32>
    %cst_29 = arith.constant dense<0.000000e+00> : vector<96x256xf32>
    %49 = tpu.matmul %48, %7, %cst_29 {dimension_numbers = #tpu.dot_dimension_numbers<[1], [0], [0], [1], [0, 0, 1, 1], [], []>} : vector<96x20xf32>, vector<20x256xf32>, vector<96x256xf32> -> vector<96x256xf32>
    %50 = arith.addf %47, %49 : vector<96x256xf32>
    %c0_30 = arith.constant 0 : index
    %c0_31 = arith.constant 0 : index
    %51 = vector.load %arg12[%c0_30, %c0_31] : memref<96x1xf32, #tpu.memory_space<vmem>>, vector<96x1xf32>
    %52 = vector.broadcast %51 : vector<96x1xf32> to vector<96x256xf32>
    %53 = arith.addf %50, %52 : vector<96x256xf32>
    %54 = vector.extract_strided_slice %53 {offsets = [0, 0], sizes = [20, 256], strides = [1, 1]} : vector<96x256xf32> to vector<20x256xf32>
    %cst_32 = arith.constant 5.000000e-01 : f32
    %55 = vector.broadcast %cst_32 : f32 to vector<20x256xf32>
    %56 = arith.mulf %55, %54 : vector<20x256xf32>
    %57 = math.tanh %56 : vector<20x256xf32>
    %cst_33 = arith.constant 5.000000e-01 : f32
    %58 = vector.broadcast %cst_33 : f32 to vector<20x256xf32>
    %59 = arith.mulf %58, %57 : vector<20x256xf32>
    %cst_34 = arith.constant 5.000000e-01 : f32
    %60 = vector.broadcast %cst_34 : f32 to vector<20x256xf32>
    %61 = arith.addf %59, %60 : vector<20x256xf32>
    %62 = vector.extract_strided_slice %53 {offsets = [24, 0], sizes = [20, 256], strides = [1, 1]} : vector<96x256xf32> to vector<20x256xf32>
    %cst_35 = arith.constant 5.000000e-01 : f32
    %63 = vector.broadcast %cst_35 : f32 to vector<20x256xf32>
    %64 = arith.mulf %63, %62 : vector<20x256xf32>
    %65 = math.tanh %64 : vector<20x256xf32>
    %cst_36 = arith.constant 5.000000e-01 : f32
    %66 = vector.broadcast %cst_36 : f32 to vector<20x256xf32>
    %67 = arith.mulf %66, %65 : vector<20x256xf32>
    %cst_37 = arith.constant 5.000000e-01 : f32
    %68 = vector.broadcast %cst_37 : f32 to vector<20x256xf32>
    %69 = arith.addf %67, %68 : vector<20x256xf32>
    %70 = vector.extract_strided_slice %53 {offsets = [48, 0], sizes = [20, 256], strides = [1, 1]} : vector<96x256xf32> to vector<20x256xf32>
    %71 = math.tanh %70 : vector<20x256xf32>
    %72 = vector.extract_strided_slice %53 {offsets = [72, 0], sizes = [20, 256], strides = [1, 1]} : vector<96x256xf32> to vector<20x256xf32>
    %cst_38 = arith.constant 5.000000e-01 : f32
    %73 = vector.broadcast %cst_38 : f32 to vector<20x256xf32>
    %74 = arith.mulf %73, %72 : vector<20x256xf32>
    %75 = math.tanh %74 : vector<20x256xf32>
    %cst_39 = arith.constant 5.000000e-01 : f32
    %76 = vector.broadcast %cst_39 : f32 to vector<20x256xf32>
    %77 = arith.mulf %76, %75 : vector<20x256xf32>
    %cst_40 = arith.constant 5.000000e-01 : f32
    %78 = vector.broadcast %cst_40 : f32 to vector<20x256xf32>
    %79 = arith.addf %77, %78 : vector<20x256xf32>
    %80 = arith.mulf %69, %8 : vector<20x256xf32>
    %81 = arith.mulf %61, %71 : vector<20x256xf32>
    %82 = arith.addf %80, %81 : vector<20x256xf32>
    %83 = math.tanh %82 : vector<20x256xf32>
    %84 = arith.mulf %79, %83 : vector<20x256xf32>
    %c0_41 = arith.constant 0 : index
    %c0_42 = arith.constant 0 : index
    %85 = vector.load %arg13[%c0_41, %c0_42] : memref<20x1xf32, #tpu.memory_space<vmem>>, vector<20x1xf32>
    %86 = vector.broadcast %85 : vector<20x1xf32> to vector<20x256xf32>
    %87 = arith.mulf %84, %86 : vector<20x256xf32>
    %cst_43 = arith.constant dense<0.000000e+00> : vector<256xf32>
    %88 = vector.multi_reduction <add>, %87, %cst_43 [0] : vector<20x256xf32> to vector<256xf32>
    %89 = vector.shape_cast %88 : vector<256xf32> to vector<1x256xf32>
    %c0_44 = arith.constant 0 : index
    %c0_45 = arith.constant 0 : index
    %90 = vector.load %arg14[%c0_44, %c0_45] : memref<1x1xf32, #tpu.memory_space<vmem>>, vector<1x1xf32>
    %91 = vector.broadcast %90 : vector<1x1xf32> to vector<1x256xf32>
    %92 = arith.addf %89, %91 : vector<1x256xf32>
    %c0_46 = arith.constant 0 : index
    %c0_47 = arith.constant 0 : index
    %93 = vector.load %arg15[%c0_46, %c0_47] : memref<1x256xf32, #tpu.memory_space<vmem>>, vector<1x256xf32>
    tpu.vector_store %arg15[%c0_46, %c0_47], %92 {strides = array<i32>} : memref<1x256xf32, #tpu.memory_space<vmem>>, vector<1x256xf32>,
    %c0_48 = arith.constant 0 : index
    %c0_49 = arith.constant 0 : index
    %94 = vector.load %arg16[%c0_48, %c0_49] : memref<20x256xf32, #tpu.memory_space<vmem>>, vector<20x256xf32>
    tpu.vector_store %arg16[%c0_48, %c0_49], %45 {strides = array<i32>} : memref<20x256xf32, #tpu.memory_space<vmem>>, vector<20x256xf32>,
    %c0_50 = arith.constant 0 : index
    %c0_51 = arith.constant 0 : index
    %95 = vector.load %arg17[%c0_50, %c0_51] : memref<20x256xf32, #tpu.memory_space<vmem>>, vector<20x256xf32>
    tpu.vector_store %arg17[%c0_50, %c0_51], %43 {strides = array<i32>} : memref<20x256xf32, #tpu.memory_space<vmem>>, vector<20x256xf32>,
    %c0_52 = arith.constant 0 : index
    %c0_53 = arith.constant 0 : index
    %96 = vector.load %arg18[%c0_52, %c0_53] : memref<20x256xf32, #tpu.memory_space<vmem>>, vector<20x256xf32>
    tpu.vector_store %arg18[%c0_52, %c0_53], %84 {strides = array<i32>} : memref<20x256xf32, #tpu.memory_space<vmem>>, vector<20x256xf32>,
    %c0_54 = arith.constant 0 : index
    %c0_55 = arith.constant 0 : index
    %97 = vector.load %arg19[%c0_54, %c0_55] : memref<20x256xf32, #tpu.memory_space<vmem>>, vector<20x256xf32>
    tpu.vector_store %arg19[%c0_54, %c0_55], %82 {strides = array<i32>} : memref<20x256xf32, #tpu.memory_space<vmem>>, vector<20x256xf32>,
    return
  }
  func.func @transform_0(%arg0: i32) -> (i32, i32) {
    %c0_i32 = arith.constant 0 : i32
    %c0_i32_0 = arith.constant 0 : i32
    return %c0_i32, %arg0 : i32, i32
  }
  func.func @transform_1(%arg0: i32) -> (i32, i32) {
    %c0_i32 = arith.constant 0 : i32
    %c0_i32_0 = arith.constant 0 : i32
    return %c0_i32, %arg0 : i32, i32
  }
  func.func @transform_2(%arg0: i32) -> (i32, i32) {
    %c0_i32 = arith.constant 0 : i32
    %c0_i32_0 = arith.constant 0 : i32
    return %c0_i32, %arg0 : i32, i32
  }
  func.func @transform_3(%arg0: i32) -> (i32, i32) {
    %c0_i32 = arith.constant 0 : i32
    %c0_i32_0 = arith.constant 0 : i32
    return %c0_i32, %arg0 : i32, i32
  }
  func.func @transform_4(%arg0: i32) -> (i32, i32) {
    %c0_i32 = arith.constant 0 : i32
    %c0_i32_0 = arith.constant 0 : i32
    return %c0_i32, %arg0 : i32, i32
  }
  func.func @transform_5(%arg0: i32) -> (i32, i32) {
    %c0_i32 = arith.constant 0 : i32
    %c0_i32_0 = arith.constant 0 : i32
    %c0_i32_1 = arith.constant 0 : i32
    return %c0_i32, %c0_i32_0 : i32, i32
  }
  func.func @transform_6(%arg0: i32) -> (i32, i32) {
    %c0_i32 = arith.constant 0 : i32
    %c0_i32_0 = arith.constant 0 : i32
    %c0_i32_1 = arith.constant 0 : i32
    return %c0_i32, %c0_i32_0 : i32, i32
  }
  func.func @transform_7(%arg0: i32) -> (i32, i32) {
    %c0_i32 = arith.constant 0 : i32
    %c0_i32_0 = arith.constant 0 : i32
    %c0_i32_1 = arith.constant 0 : i32
    return %c0_i32, %c0_i32_0 : i32, i32
  }
  func.func @transform_8(%arg0: i32) -> (i32, i32) {
    %c0_i32 = arith.constant 0 : i32
    %c0_i32_0 = arith.constant 0 : i32
    %c0_i32_1 = arith.constant 0 : i32
    return %c0_i32, %c0_i32_0 : i32, i32
  }
  func.func @transform_9(%arg0: i32) -> (i32, i32) {
    %c0_i32 = arith.constant 0 : i32
    %c0_i32_0 = arith.constant 0 : i32
    %c0_i32_1 = arith.constant 0 : i32
    return %c0_i32, %c0_i32_0 : i32, i32
  }
  func.func @transform_10(%arg0: i32) -> (i32, i32) {
    %c0_i32 = arith.constant 0 : i32
    %c0_i32_0 = arith.constant 0 : i32
    %c0_i32_1 = arith.constant 0 : i32
    return %c0_i32, %c0_i32_0 : i32, i32
  }
  func.func @transform_11(%arg0: i32) -> (i32, i32) {
    %c0_i32 = arith.constant 0 : i32
    %c0_i32_0 = arith.constant 0 : i32
    %c0_i32_1 = arith.constant 0 : i32
    return %c0_i32, %c0_i32_0 : i32, i32
  }
  func.func @transform_12(%arg0: i32) -> (i32, i32) {
    %c0_i32 = arith.constant 0 : i32
    %c0_i32_0 = arith.constant 0 : i32
    %c0_i32_1 = arith.constant 0 : i32
    return %c0_i32, %c0_i32_0 : i32, i32
  }
  func.func @transform_13(%arg0: i32) -> (i32, i32) {
    %c0_i32 = arith.constant 0 : i32
    %c0_i32_0 = arith.constant 0 : i32
    %c0_i32_1 = arith.constant 0 : i32
    return %c0_i32, %c0_i32_0 : i32, i32
  }
  func.func @transform_14(%arg0: i32) -> (i32, i32) {
    %c0_i32 = arith.constant 0 : i32
    %c0_i32_0 = arith.constant 0 : i32
    return %c0_i32, %arg0 : i32, i32
  }
  func.func @transform_15(%arg0: i32) -> (i32, i32) {
    %c0_i32 = arith.constant 0 : i32
    %c0_i32_0 = arith.constant 0 : i32
    return %c0_i32, %arg0 : i32, i32
  }
  func.func @transform_16(%arg0: i32) -> (i32, i32) {
    %c0_i32 = arith.constant 0 : i32
    %c0_i32_0 = arith.constant 0 : i32
    return %c0_i32, %arg0 : i32, i32
  }
  func.func @transform_17(%arg0: i32) -> (i32, i32) {
    %c0_i32 = arith.constant 0 : i32
    %c0_i32_0 = arith.constant 0 : i32
    return %c0_i32, %arg0 : i32, i32
  }
  func.func @transform_18(%arg0: i32) -> (i32, i32) {
    %c0_i32 = arith.constant 0 : i32
    %c0_i32_0 = arith.constant 0 : i32
    return %c0_i32, %arg0 : i32, i32
  }
}

</mosaic_0001>

<llo_original>
// kernel: tpu_custom_call.1
$region0: #{tpu_custom_call.1}
  #allocation0 [shape = 'u32[]', space=smem, size = 0x4, offset = 0x4, fixed_abs, tag = 'smem constant byte address 0x4 - core index']
  #allocation1 [shape = 'u32[144,128]{1,0:T(1,128)}', space=vmem, size = 0x12000, scoped, tag = 'internal scratch']
  #allocation2 [shape = 'f32[1,1]{1,0:T(1,128)S(1)}', space=vmem, size = 0x200, scoped, tag = 'scoped memory for tpu_custom_call.1']
  %s0 = inlined_call_operand.vmem [shape: f32[1,512], index: 0, kind: input, shape index: {}]
  %s1 = inlined_call_operand.vmem [shape: f32[20,512], index: 1, kind: input, shape index: {}]
  %s2 = inlined_call_operand.vmem [shape: f32[20,512], index: 2, kind: input, shape index: {}]
  %s3 = inlined_call_operand.vmem [shape: f32[20,512], index: 3, kind: input, shape index: {}]
  %s4 = inlined_call_operand.vmem [shape: f32[20,512], index: 4, kind: input, shape index: {}]
  %s5 = inlined_call_operand.vmem [shape: f32[96,1], index: 5, kind: input, shape index: {}]
  %s6 = inlined_call_operand.vmem [shape: f32[96,1], index: 6, kind: input, shape index: {}]
  %s7 = inlined_call_operand.vmem [shape: f32[96,20], index: 7, kind: input, shape index: {}]
  %s8 = inlined_call_operand.vmem [shape: f32[96,1], index: 8, kind: input, shape index: {}]
  %s9 = inlined_call_operand.vmem [shape: f32[96,20], index: 9, kind: input, shape index: {}]
  %s10 = inlined_call_operand.vmem [shape: f32[96,20], index: 10, kind: input, shape index: {}]
  %s11 = inlined_call_operand.vmem [shape: f32[96,1], index: 11, kind: input, shape index: {}]
  %s12 = inlined_call_operand.vmem [shape: f32[20,1], index: 12, kind: input, shape index: {}]
  %s13 = inlined_call_operand.<no memory space> [shape: f32[1,1], index: 13, kind: input, shape index: {}]
  %s14 = inlined_call_operand.hbm [shape: f32[1,512], index: 14, kind: output, shape index: {0}]
  %s15 = inlined_call_operand.hbm [shape: f32[20,512], index: 15, kind: output, shape index: {1}]
  %s16 = inlined_call_operand.hbm [shape: f32[20,512], index: 16, kind: output, shape index: {2}]
  %s17 = inlined_call_operand.hbm [shape: f32[20,512], index: 17, kind: output, shape index: {3}]
  %s18 = inlined_call_operand.hbm [shape: f32[20,512], index: 18, kind: output, shape index: {4}]
  %19 = xla_tuple %s14, %s15, %s16, %s17, %s18
  %s20 = sld [smem:[#allocation0]]
  $region213: #{tpu_custom_call.1} parent=0
    _
  %s22 = ssub.s32 1, %s20
  %s23 = scalar_select 0, %s22, %s20
  %v24 = vstv %s13
  %25 = vst [vmem:[#allocation2] sm:$0x1] %v24
  $region1: #{tpu_custom_call.1} parent=0
    #allocation3 [shape = 'u8[49152]{0}', space=vmem, size = 0xc000, scoped, tag = 'input window, operand 1']
    #allocation4 [shape = 'u8[49152]{0}', space=vmem, size = 0xc000, scoped, tag = 'input window, operand 2']
    #allocation5 [shape = 'u8[49152]{0}', space=vmem, size = 0xc000, scoped, tag = 'input window, operand 3']
    #allocation6 [shape = 'u8[49152]{0}', space=vmem, size = 0xc000, scoped, tag = 'input window, operand 4']
    #allocation7 [shape = 'u8[2048]{0}', space=vmem, size = 0x800, scoped, tag = 'output window, operand 0']
    #allocation8 [shape = 's32[2]{0}', space=sflag, size = 0x8, scoped, tag = 'scoped memory for tpu_custom_call.1']
    #allocation9 [shape = 'u8[49152]{0}', space=vmem, size = 0xc000, scoped, tag = 'output window, operand 1']
    #allocation10 [shape = 's32[2]{0}', space=sflag, size = 0x8, scoped, tag = 'scoped memory for tpu_custom_call.1']
    #allocation11 [shape = 'u8[49152]{0}', space=vmem, size = 0xc000, scoped, tag = 'output window, operand 2']
    #allocation12 [shape = 'u8[49152]{0}', space=vmem, size = 0xc000, scoped, tag = 'output window, operand 3']
    #allocation13 [shape = 's32[2]{0}', space=sflag, size = 0x8, scoped, tag = 'scoped memory for tpu_custom_call.1']
    #allocation14 [shape = 'u8[49152]{0}', space=vmem, size = 0xc000, scoped, tag = 'output window, operand 4']
    %26 = vsyncpa [#allocation8], 0
    %s27 = scalar_lea.sflag [#allocation8], 1
    %28 = vsyncpa %s27, 0
    %29 = vsyncpa [#allocation10], 0
    %s30 = scalar_lea.sflag [#allocation10], 1
    %31 = vsyncpa %s30, 0
    %32 = vsyncpa [#allocation13], 0
    %s33 = scalar_lea.sflag [#allocation13], 1
    %34 = vsyncpa %s33, 0
    loop: start=0, step=1, limit=4
    $region2: #{tpu_custom_call.1} parent=1 // loop_pre_header
      _
    $region3: #{tpu_custom_call.1} parent=1 // loop_header
      %s36 = sphi 0, %s40
      %p37 = scmp.ge.s32.totalorder %s36, 4
      %s46 = sphi 0, %s48
      %s49 = sphi 0, %s46
      %s50 = sphi 0, %s49
      %s66 = sphi 0, %s50
      %s72 = sphi 0, %s74
      %s75 = sphi 0, %s72
      %s76 = sphi 0, %s75
      %s92 = sphi 0, %s76
      %s98 = sphi 0, %s100
      %s101 = sphi 0, %s98
      %s102 = sphi 0, %s101
      %s118 = sphi 0, %s102
      %s124 = sphi 0, %s126
      %s127 = sphi 0, %s124
      %s128 = sphi 0, %s127
      %s144 = sphi 0, %s128
      %s150 = sphi 0, %s152
      %s153 = sphi 0, %s150
      %s154 = sphi 0, %s153
      %s170 = sphi 0, %s154
      %s174 = sphi 0, %s174
      %s176 = sphi 0, %s174
      %s177 = sphi 0, %s176
      %s191 = sphi 0, %s177
      %s195 = sphi 0, %s195
      %s197 = sphi 0, %s195
      %s198 = sphi 0, %s197
      %s212 = sphi 0, %s198
      %s216 = sphi 0, %s216
      %s218 = sphi 0, %s216
      %s219 = sphi 0, %s218
      %s233 = sphi 0, %s219
      %s237 = sphi 0, %s237
      %s239 = sphi 0, %s237
      %s240 = sphi 0, %s239
      %s254 = sphi 0, %s240
      %s258 = sphi 0, %s258
      %s260 = sphi 0, %s258
      %s261 = sphi 0, %s260
      %s275 = sphi 0, %s261
      %s279 = sphi 0, %s279
      %s281 = sphi 0, %s279
      %s282 = sphi 0, %s281
      %s296 = sphi 0, %s282
      %s300 = sphi 0, %s300
      %s302 = sphi 0, %s300
      %s303 = sphi 0, %s302
      %s317 = sphi 0, %s303
      %s321 = sphi 0, %s321
      %s323 = sphi 0, %s321
      %s324 = sphi 0, %s323
      %s338 = sphi 0, %s324
      %s342 = sphi 0, %s342
      %s344 = sphi 0, %s342
      %s345 = sphi 0, %s344
      %s359 = sphi 0, %s345
      %s365 = sphi 0, %s367
      %s368 = sphi 0, %s365
      %s369 = sphi 0, %s368
      %s385 = sphi 0, %s369
      %s391 = sphi 0, %s393
      %s394 = sphi 0, %s391
      %s395 = sphi 0, %s394
      %s411 = sphi 0, %s395
      %s417 = sphi 0, %s419
      %s420 = sphi 0, %s417
      %s421 = sphi 0, %s420
      %s437 = sphi 0, %s421
      %s443 = sphi 0, %s445
      %s446 = sphi 0, %s443
      %s447 = sphi 0, %s446
      %s463 = sphi 0, %s447
      %s469 = sphi 0, %s471
      %s472 = sphi 0, %s469
      %s473 = sphi 0, %s472
      %s489 = sphi 0, %s473
    $region4: #{tpu_custom_call.1} parent=1 // loop_header_branch
      %39 = sbr.rel (%p37) target = $region8
    $region5: #{tpu_custom_call.1} parent=1 // loop_body
      %s41 = ssub.s32 %s36, 1
      %s42 = ssub.s32 %s36, 2
      %s43 = sadd.s32 %s36, 1
      %s44 = ssub.s32 %s36, %s43
      %p45 = scmp.eq.s32.totalorder %s44, 0
      %s47 = sadd.s32 %s46, 1
      %s48 = scalar_select %p45, %s46, %s47
      %p51 = pneg %p45
      %p52 = scmp.eq.s32.totalorder %s36, 1
      %p53 = por %p51, %p52
      %p54 = scmp.ne.s32.totalorder %s46, %s49
      %p55 = scmp.eq.s32.totalorder %s36, 0
      %p56 = por %p54, %p55
      %p57 = scmp.ne.s32.totalorder %s46, %s49
      %p58 = scmp.eq.s32.totalorder %s41, 1
      %p59 = por %p57, %p58
      %p60 = scmp.ne.s32.totalorder %s49, %s50
      %p61 = scmp.eq.s32.totalorder %s41, 0
      %p62 = por %p60, %p61
      %p63 = scmp.ne.s32.totalorder %s49, %s50
      %p64 = scmp.eq.s32.totalorder %s42, 1
      %p65 = por %p63, %p64
      %p67 = scmp.ne.s32.totalorder %s50, %s66
      %p68 = scmp.eq.s32.totalorder %s42, 0
      %p69 = por %p67, %p68
      %s70 = ssub.s32 %s36, %s43
      %p71 = scmp.eq.s32.totalorder %s70, 0
      %s73 = sadd.s32 %s72, 1
      %s74 = scalar_select %p71, %s72, %s73
      %p77 = pneg %p71
      %p78 = scmp.eq.s32.totalorder %s36, 1
      %p79 = por %p77, %p78
      %p80 = scmp.ne.s32.totalorder %s72, %s75
      %p81 = scmp.eq.s32.totalorder %s36, 0
      %p82 = por %p80, %p81
      %p83 = scmp.ne.s32.totalorder %s72, %s75
      %p84 = scmp.eq.s32.totalorder %s41, 1
      %p85 = por %p83, %p84
      %p86 = scmp.ne.s32.totalorder %s75, %s76
      %p87 = scmp.eq.s32.totalorder %s41, 0
      %p88 = por %p86, %p87
      %p89 = scmp.ne.s32.totalorder %s75, %s76
      %p90 = scmp.eq.s32.totalorder %s42, 1
      %p91 = por %p89, %p90
      %p93 = scmp.ne.s32.totalorder %s76, %s92
      %p94 = scmp.eq.s32.totalorder %s42, 0
      %p95 = por %p93, %p94
      %s96 = ssub.s32 %s36, %s43
      %p97 = scmp.eq.s32.totalorder %s96, 0
      %s99 = sadd.s32 %s98, 1
      %s100 = scalar_select %p97, %s98, %s99
      %p103 = pneg %p97
      %p104 = scmp.eq.s32.totalorder %s36, 1
      %p105 = por %p103, %p104
      %p106 = scmp.ne.s32.totalorder %s98, %s101
      %p107 = scmp.eq.s32.totalorder %s36, 0
      %p108 = por %p106, %p107
      %p109 = scmp.ne.s32.totalorder %s98, %s101
      %p110 = scmp.eq.s32.totalorder %s41, 1
      %p111 = por %p109, %p110
      %p112 = scmp.ne.s32.totalorder %s101, %s102
      %p113 = scmp.eq.s32.totalorder %s41, 0
      %p114 = por %p112, %p113
      %p115 = scmp.ne.s32.totalorder %s101, %s102
      %p116 = scmp.eq.s32.totalorder %s42, 1
      %p117 = por %p115, %p116
      %p119 = scmp.ne.s32.totalorder %s102, %s118
      %p120 = scmp.eq.s32.totalorder %s42, 0
      %p121 = por %p119, %p120
      %s122 = ssub.s32 %s36, %s43
      %p123 = scmp.eq.s32.totalorder %s122, 0
      %s125 = sadd.s32 %s124, 1
      %s126 = scalar_select %p123, %s124, %s125
      %p129 = pneg %p123
      %p130 = scmp.eq.s32.totalorder %s36, 1
      %p131 = por %p129, %p130
      %p132 = scmp.ne.s32.totalorder %s124, %s127
      %p133 = scmp.eq.s32.totalorder %s36, 0
      %p134 = por %p132, %p133
      %p135 = scmp.ne.s32.totalorder %s124, %s127
      %p136 = scmp.eq.s32.totalorder %s41, 1
      %p137 = por %p135, %p136
      %p138 = scmp.ne.s32.totalorder %s127, %s128
      %p139 = scmp.eq.s32.totalorder %s41, 0
      %p140 = por %p138, %p139
      %p141 = scmp.ne.s32.totalorder %s127, %s128
      %p142 = scmp.eq.s32.totalorder %s42, 1
      %p143 = por %p141, %p142
      %p145 = scmp.ne.s32.totalorder %s128, %s144
      %p146 = scmp.eq.s32.totalorder %s42, 0
      %p147 = por %p145, %p146
      %s148 = ssub.s32 %s36, %s43
      %p149 = scmp.eq.s32.totalorder %s148, 0
      %s151 = sadd.s32 %s150, 1
      %s152 = scalar_select %p149, %s150, %s151
      %p155 = pneg %p149
      %p156 = scmp.eq.s32.totalorder %s36, 1
      %p157 = por %p155, %p156
      %p158 = scmp.ne.s32.totalorder %s150, %s153
      %p159 = scmp.eq.s32.totalorder %s36, 0
      %p160 = por %p158, %p159
      %p161 = scmp.ne.s32.totalorder %s150, %s153
      %p162 = scmp.eq.s32.totalorder %s41, 1
      %p163 = por %p161, %p162
      %p164 = scmp.ne.s32.totalorder %s153, %s154
      %p165 = scmp.eq.s32.totalorder %s41, 0
      %p166 = por %p164, %p165
      %p167 = scmp.ne.s32.totalorder %s153, %s154
      %p168 = scmp.eq.s32.totalorder %s42, 1
      %p169 = por %p167, %p168
      %p171 = scmp.ne.s32.totalorder %s154, %s170
      %p172 = scmp.eq.s32.totalorder %s42, 0
      %p173 = por %p171, %p172
      %s175 = sadd.s32 %s174, 1
      %p178 = scmp.eq.s32.totalorder %s36, 1
      %p179 = scmp.ne.s32.totalorder %s174, %s176
      %p180 = scmp.eq.s32.totalorder %s36, 0
      %p181 = por %p179, %p180
      %p182 = scmp.ne.s32.totalorder %s174, %s176
      %p183 = scmp.eq.s32.totalorder %s41, 1
      %p184 = por %p182, %p183
      %p185 = scmp.ne.s32.totalorder %s176, %s177
      %p186 = scmp.eq.s32.totalorder %s41, 0
      %p187 = por %p185, %p186
      %p188 = scmp.ne.s32.totalorder %s176, %s177
      %p189 = scmp.eq.s32.totalorder %s42, 1
      %p190 = por %p188, %p189
      %p192 = scmp.ne.s32.totalorder %s177, %s191
      %p193 = scmp.eq.s32.totalorder %s42, 0
      %p194 = por %p192, %p193
      %s196 = sadd.s32 %s195, 1
      %p199 = scmp.eq.s32.totalorder %s36, 1
      %p200 = scmp.ne.s32.totalorder %s195, %s197
      %p201 = scmp.eq.s32.totalorder %s36, 0
      %p202 = por %p200, %p201
      %p203 = scmp.ne.s32.totalorder %s195, %s197
      %p204 = scmp.eq.s32.totalorder %s41, 1
      %p205 = por %p203, %p204
      %p206 = scmp.ne.s32.totalorder %s197, %s198
      %p207 = scmp.eq.s32.totalorder %s41, 0
      %p208 = por %p206, %p207
      %p209 = scmp.ne.s32.totalorder %s197, %s198
      %p210 = scmp.eq.s32.totalorder %s42, 1
      %p211 = por %p209, %p210
      %p213 = scmp.ne.s32.totalorder %s198, %s212
      %p214 = scmp.eq.s32.totalorder %s42, 0
      %p215 = por %p213, %p214
      %s217 = sadd.s32 %s216, 1
      %p220 = scmp.eq.s32.totalorder %s36, 1
      %p221 = scmp.ne.s32.totalorder %s216, %s218
      %p222 = scmp.eq.s32.totalorder %s36, 0
      %p223 = por %p221, %p222
      %p224 = scmp.ne.s32.totalorder %s216, %s218
      %p225 = scmp.eq.s32.totalorder %s41, 1
      %p226 = por %p224, %p225
      %p227 = scmp.ne.s32.totalorder %s218, %s219
      %p228 = scmp.eq.s32.totalorder %s41, 0
      %p229 = por %p227, %p228
      %p230 = scmp.ne.s32.totalorder %s218, %s219
      %p231 = scmp.eq.s32.totalorder %s42, 1
      %p232 = por %p230, %p231
      %p234 = scmp.ne.s32.totalorder %s219, %s233
      %p235 = scmp.eq.s32.totalorder %s42, 0
      %p236 = por %p234, %p235
      %s238 = sadd.s32 %s237, 1
      %p241 = scmp.eq.s32.totalorder %s36, 1
      %p242 = scmp.ne.s32.totalorder %s237, %s239
      %p243 = scmp.eq.s32.totalorder %s36, 0
      %p244 = por %p242, %p243
      %p245 = scmp.ne.s32.totalorder %s237, %s239
      %p246 = scmp.eq.s32.totalorder %s41, 1
      %p247 = por %p245, %p246
      %p248 = scmp.ne.s32.totalorder %s239, %s240
      %p249 = scmp.eq.s32.totalorder %s41, 0
      %p250 = por %p248, %p249
      %p251 = scmp.ne.s32.totalorder %s239, %s240
      %p252 = scmp.eq.s32.totalorder %s42, 1
      %p253 = por %p251, %p252
      %p255 = scmp.ne.s32.totalorder %s240, %s254
      %p256 = scmp.eq.s32.totalorder %s42, 0
      %p257 = por %p255, %p256
      %s259 = sadd.s32 %s258, 1
      %p262 = scmp.eq.s32.totalorder %s36, 1
      %p263 = scmp.ne.s32.totalorder %s258, %s260
      %p264 = scmp.eq.s32.totalorder %s36, 0
      %p265 = por %p263, %p264
      %p266 = scmp.ne.s32.totalorder %s258, %s260
      %p267 = scmp.eq.s32.totalorder %s41, 1
      %p268 = por %p266, %p267
      %p269 = scmp.ne.s32.totalorder %s260, %s261
      %p270 = scmp.eq.s32.totalorder %s41, 0
      %p271 = por %p269, %p270
      %p272 = scmp.ne.s32.totalorder %s260, %s261
      %p273 = scmp.eq.s32.totalorder %s42, 1
      %p274 = por %p272, %p273
      %p276 = scmp.ne.s32.totalorder %s261, %s275
      %p277 = scmp.eq.s32.totalorder %s42, 0
      %p278 = por %p276, %p277
      %s280 = sadd.s32 %s279, 1
      %p283 = scmp.eq.s32.totalorder %s36, 1
      %p284 = scmp.ne.s32.totalorder %s279, %s281
      %p285 = scmp.eq.s32.totalorder %s36, 0
      %p286 = por %p284, %p285
      %p287 = scmp.ne.s32.totalorder %s279, %s281
      %p288 = scmp.eq.s32.totalorder %s41, 1
      %p289 = por %p287, %p288
      %p290 = scmp.ne.s32.totalorder %s281, %s282
      %p291 = scmp.eq.s32.totalorder %s41, 0
      %p292 = por %p290, %p291
      %p293 = scmp.ne.s32.totalorder %s281, %s282
      %p294 = scmp.eq.s32.totalorder %s42, 1
      %p295 = por %p293, %p294
      %p297 = scmp.ne.s32.totalorder %s282, %s296
      %p298 = scmp.eq.s32.totalorder %s42, 0
      %p299 = por %p297, %p298
      %s301 = sadd.s32 %s300, 1
      %p304 = scmp.eq.s32.totalorder %s36, 1
      %p305 = scmp.ne.s32.totalorder %s300, %s302
      %p306 = scmp.eq.s32.totalorder %s36, 0
      %p307 = por %p305, %p306
      %p308 = scmp.ne.s32.totalorder %s300, %s302
      %p309 = scmp.eq.s32.totalorder %s41, 1
      %p310 = por %p308, %p309
      %p311 = scmp.ne.s32.totalorder %s302, %s303
      %p312 = scmp.eq.s32.totalorder %s41, 0
      %p313 = por %p311, %p312
      %p314 = scmp.ne.s32.totalorder %s302, %s303
      %p315 = scmp.eq.s32.totalorder %s42, 1
      %p316 = por %p314, %p315
      %p318 = scmp.ne.s32.totalorder %s303, %s317
      %p319 = scmp.eq.s32.totalorder %s42, 0
      %p320 = por %p318, %p319
      %s322 = sadd.s32 %s321, 1
      %p325 = scmp.eq.s32.totalorder %s36, 1
      %p326 = scmp.ne.s32.totalorder %s321, %s323
      %p327 = scmp.eq.s32.totalorder %s36, 0
      %p328 = por %p326, %p327
      %p329 = scmp.ne.s32.totalorder %s321, %s323
      %p330 = scmp.eq.s32.totalorder %s41, 1
      %p331 = por %p329, %p330
      %p332 = scmp.ne.s32.totalorder %s323, %s324
      %p333 = scmp.eq.s32.totalorder %s41, 0
      %p334 = por %p332, %p333
      %p335 = scmp.ne.s32.totalorder %s323, %s324
      %p336 = scmp.eq.s32.totalorder %s42, 1
      %p337 = por %p335, %p336
      %p339 = scmp.ne.s32.totalorder %s324, %s338
      %p340 = scmp.eq.s32.totalorder %s42, 0
      %p341 = por %p339, %p340
      %s343 = sadd.s32 %s342, 1
      %p346 = scmp.eq.s32.totalorder %s36, 1
      %p347 = scmp.ne.s32.totalorder %s342, %s344
      %p348 = scmp.eq.s32.totalorder %s36, 0
      %p349 = por %p347, %p348
      %p350 = scmp.ne.s32.totalorder %s342, %s344
      %p351 = scmp.eq.s32.totalorder %s41, 1
      %p352 = por %p350, %p351
      %p353 = scmp.ne.s32.totalorder %s344, %s345
      %p354 = scmp.eq.s32.totalorder %s41, 0
      %p355 = por %p353, %p354
      %p356 = scmp.ne.s32.totalorder %s344, %s345
      %p357 = scmp.eq.s32.totalorder %s42, 1
      %p358 = por %p356, %p357
      %p360 = scmp.ne.s32.totalorder %s345, %s359
      %p361 = scmp.eq.s32.totalorder %s42, 0
      %p362 = por %p360, %p361
      %s363 = ssub.s32 %s36, %s43
      %p364 = scmp.eq.s32.totalorder %s363, 0
      %s366 = sadd.s32 %s365, 1
      %s367 = scalar_select %p364, %s365, %s366
      %p370 = pneg %p364
      %p371 = scmp.eq.s32.totalorder %s36, 1
      %p372 = por %p370, %p371
      %p373 = scmp.ne.s32.totalorder %s365, %s368
      %p374 = scmp.eq.s32.totalorder %s36, 0
      %p375 = por %p373, %p374
      %p376 = scmp.ne.s32.totalorder %s365, %s368
      %p377 = scmp.eq.s32.totalorder %s41, 1
      %p378 = por %p376, %p377
      %p379 = scmp.ne.s32.totalorder %s368, %s369
      %p380 = scmp.eq.s32.totalorder %s41, 0
      %p381 = por %p379, %p380
      %p382 = scmp.ne.s32.totalorder %s368, %s369
      %p383 = scmp.eq.s32.totalorder %s42, 1
      %p384 = por %p382, %p383
      %p386 = scmp.ne.s32.totalorder %s369, %s385
      %p387 = scmp.eq.s32.totalorder %s42, 0
      %p388 = por %p386, %p387
      %s389 = ssub.s32 %s36, %s43
      %p390 = scmp.eq.s32.totalorder %s389, 0
      %s392 = sadd.s32 %s391, 1
      %s393 = scalar_select %p390, %s391, %s392
      %p396 = pneg %p390
      %p397 = scmp.eq.s32.totalorder %s36, 1
      %p398 = por %p396, %p397
      %p399 = scmp.ne.s32.totalorder %s391, %s394
      %p400 = scmp.eq.s32.totalorder %s36, 0
      %p401 = por %p399, %p400
      %p402 = scmp.ne.s32.totalorder %s391, %s394
      %p403 = scmp.eq.s32.totalorder %s41, 1
      %p404 = por %p402, %p403
      %p405 = scmp.ne.s32.totalorder %s394, %s395
      %p406 = scmp.eq.s32.totalorder %s41, 0
      %p407 = por %p405, %p406
      %p408 = scmp.ne.s32.totalorder %s394, %s395
      %p409 = scmp.eq.s32.totalorder %s42, 1
      %p410 = por %p408, %p409
      %p412 = scmp.ne.s32.totalorder %s395, %s411
      %p413 = scmp.eq.s32.totalorder %s42, 0
      %p414 = por %p412, %p413
      %s415 = ssub.s32 %s36, %s43
      %p416 = scmp.eq.s32.totalorder %s415, 0
      %s418 = sadd.s32 %s417, 1
      %s419 = scalar_select %p416, %s417, %s418
      %p422 = pneg %p416
      %p423 = scmp.eq.s32.totalorder %s36, 1
      %p424 = por %p422, %p423
      %p425 = scmp.ne.s32.totalorder %s417, %s420
      %p426 = scmp.eq.s32.totalorder %s36, 0
      %p427 = por %p425, %p426
      %p428 = scmp.ne.s32.totalorder %s417, %s420
      %p429 = scmp.eq.s32.totalorder %s41, 1
      %p430 = por %p428, %p429
      %p431 = scmp.ne.s32.totalorder %s420, %s421
      %p432 = scmp.eq.s32.totalorder %s41, 0
      %p433 = por %p431, %p432
      %p434 = scmp.ne.s32.totalorder %s420, %s421
      %p435 = scmp.eq.s32.totalorder %s42, 1
      %p436 = por %p434, %p435
      %p438 = scmp.ne.s32.totalorder %s421, %s437
      %p439 = scmp.eq.s32.totalorder %s42, 0
      %p440 = por %p438, %p439
      %s441 = ssub.s32 %s36, %s43
      %p442 = scmp.eq.s32.totalorder %s441, 0
      %s444 = sadd.s32 %s443, 1
      %s445 = scalar_select %p442, %s443, %s444
      %p448 = pneg %p442
      %p449 = scmp.eq.s32.totalorder %s36, 1
      %p450 = por %p448, %p449
      %p451 = scmp.ne.s32.totalorder %s443, %s446
      %p452 = scmp.eq.s32.totalorder %s36, 0
      %p453 = por %p451, %p452
      %p454 = scmp.ne.s32.totalorder %s443, %s446
      %p455 = scmp.eq.s32.totalorder %s41, 1
      %p456 = por %p454, %p455
      %p457 = scmp.ne.s32.totalorder %s446, %s447
      %p458 = scmp.eq.s32.totalorder %s41, 0
      %p459 = por %p457, %p458
      %p460 = scmp.ne.s32.totalorder %s446, %s447
      %p461 = scmp.eq.s32.totalorder %s42, 1
      %p462 = por %p460, %p461
      %p464 = scmp.ne.s32.totalorder %s447, %s463
      %p465 = scmp.eq.s32.totalorder %s42, 0
      %p466 = por %p464, %p465
      %s467 = ssub.s32 %s36, %s43
      %p468 = scmp.eq.s32.totalorder %s467, 0
      %s470 = sadd.s32 %s469, 1
      %s471 = scalar_select %p468, %s469, %s470
      %p474 = pneg %p468
      %p475 = scmp.eq.s32.totalorder %s36, 1
      %p476 = por %p474, %p475
      %p477 = scmp.ne.s32.totalorder %s469, %s472
      %p478 = scmp.eq.s32.totalorder %s36, 0
      %p479 = por %p477, %p478
      %p480 = scmp.ne.s32.totalorder %s469, %s472
      %p481 = scmp.eq.s32.totalorder %s41, 1
      %p482 = por %p480, %p481
      %p483 = scmp.ne.s32.totalorder %s472, %s473
      %p484 = scmp.eq.s32.totalorder %s41, 0
      %p485 = por %p483, %p484
      %p486 = scmp.ne.s32.totalorder %s472, %s473
      %p487 = scmp.eq.s32.totalorder %s42, 1
      %p488 = por %p486, %p487
      %p490 = scmp.ne.s32.totalorder %s473, %s489
      %p491 = scmp.eq.s32.totalorder %s42, 0
      %p492 = por %p490, %p491
      %p493 = scmp.le.s32.totalorder 1, %s36
      %p494 = scmp.lt.s32.totalorder %s36, 3
      %p495 = pnand %p493, %p494
      %p496 = pneg %p495
      // Predicated region
      $region9: #{tpu_custom_call.1} parent=5 // pred_check
        _
      $region10: #{tpu_custom_call.1} parent=5 // pred_check_branch
        %498 = sbr.rel (%p495) target = $region12
      $region11: #{tpu_custom_call.1} parent=5 // pred_region
        %s499 = ssub.s32 %s36, 1
        // Predicated region
        $region13: #{tpu_custom_call.1} parent=11 // pred_check
          %p500 = pneg %p187
        $region14: #{tpu_custom_call.1} parent=11 // pred_check_branch
          %502 = sbr.rel (%p500) target = $region16
        $region15: #{tpu_custom_call.1} parent=11 // pred_region
          _
        $region16: #{tpu_custom_call.1} parent=11 // pred_fallthru
          _
        // Predicated region
        $region17: #{tpu_custom_call.1} parent=11 // pred_check
          %p503 = pneg %p208
        $region18: #{tpu_custom_call.1} parent=11 // pred_check_branch
          %505 = sbr.rel (%p503) target = $region20
        $region19: #{tpu_custom_call.1} parent=11 // pred_region
          _
        $region20: #{tpu_custom_call.1} parent=11 // pred_fallthru
          _
        // Predicated region
        $region21: #{tpu_custom_call.1} parent=11 // pred_check
          %p506 = pneg %p229
        $region22: #{tpu_custom_call.1} parent=11 // pred_check_branch
          %508 = sbr.rel (%p506) target = $region24
        $region23: #{tpu_custom_call.1} parent=11 // pred_region
          _
        $region24: #{tpu_custom_call.1} parent=11 // pred_fallthru
          _
        // Predicated region
        $region25: #{tpu_custom_call.1} parent=11 // pred_check
          %p509 = pneg %p250
        $region26: #{tpu_custom_call.1} parent=11 // pred_check_branch
          %511 = sbr.rel (%p509) target = $region28
        $region27: #{tpu_custom_call.1} parent=11 // pred_region
          _
        $region28: #{tpu_custom_call.1} parent=11 // pred_fallthru
          _
        // Predicated region
        $region29: #{tpu_custom_call.1} parent=11 // pred_check
          %p512 = pneg %p271
        $region30: #{tpu_custom_call.1} parent=11 // pred_check_branch
          %514 = sbr.rel (%p512) target = $region32
        $region31: #{tpu_custom_call.1} parent=11 // pred_region
          _
        $region32: #{tpu_custom_call.1} parent=11 // pred_fallthru
          _
        // Predicated region
        $region33: #{tpu_custom_call.1} parent=11 // pred_check
          %p515 = pneg %p292
        $region34: #{tpu_custom_call.1} parent=11 // pred_check_branch
          %517 = sbr.rel (%p515) target = $region36
        $region35: #{tpu_custom_call.1} parent=11 // pred_region
          _
        $region36: #{tpu_custom_call.1} parent=11 // pred_fallthru
          _
        // Predicated region
        $region37: #{tpu_custom_call.1} parent=11 // pred_check
          %p518 = pneg %p313
        $region38: #{tpu_custom_call.1} parent=11 // pred_check_branch
          %520 = sbr.rel (%p518) target = $region40
        $region39: #{tpu_custom_call.1} parent=11 // pred_region
          _
        $region40: #{tpu_custom_call.1} parent=11 // pred_fallthru
          _
        // Predicated region
        $region41: #{tpu_custom_call.1} parent=11 // pred_check
          %p521 = pneg %p334
        $region42: #{tpu_custom_call.1} parent=11 // pred_check_branch
          %523 = sbr.rel (%p521) target = $region44
        $region43: #{tpu_custom_call.1} parent=11 // pred_region
          _
        $region44: #{tpu_custom_call.1} parent=11 // pred_fallthru
          _
        // Predicated region
        $region45: #{tpu_custom_call.1} parent=11 // pred_check
          %p524 = pneg %p355
        $region46: #{tpu_custom_call.1} parent=11 // pred_check_branch
          %526 = sbr.rel (%p524) target = $region48
        $region47: #{tpu_custom_call.1} parent=11 // pred_region
          _
        $region48: #{tpu_custom_call.1} parent=11 // pred_fallthru
          _
      $region12: #{tpu_custom_call.1} parent=5 // pred_fallthru
        _
      %p527 = scmp.lt.s32.totalorder %s36, 2
      // Predicated region
      $region49: #{tpu_custom_call.1} parent=5 // pred_check
        %p528 = pneg %p527
      $region50: #{tpu_custom_call.1} parent=5 // pred_check_branch
        %530 = sbr.rel (%p528) target = $region52
      $region51: #{tpu_custom_call.1} parent=5 // pred_region
        // Predicated region
        $region53: #{tpu_custom_call.1} parent=51 // pred_check
          %p531 = pneg %p56
        $region54: #{tpu_custom_call.1} parent=51 // pred_check_branch
          %533 = sbr.rel (%p531) target = $region56
        $region55: #{tpu_custom_call.1} parent=51 // pred_region
          %s534 = smul.u32 2, %s36
          %p535 = scmp.lt.s32.totalorder %s534, 3
          %s536 = scalar_select %p535, %s534, 3
          %s537 = scalar_lea.vmem %s0, %s536
          %s538 = smul.u32 2, %s36
        $region56: #{tpu_custom_call.1} parent=51 // pred_fallthru
          _
        // Predicated region
        $region57: #{tpu_custom_call.1} parent=51 // pred_check
          %p539 = pneg %p82
        $region58: #{tpu_custom_call.1} parent=51 // pred_check_branch
          %541 = sbr.rel (%p539) target = $region60
        $region59: #{tpu_custom_call.1} parent=51 // pred_region
          %s542 = sand.u32 %s72, 1
          %s543 = sand.u32 %s72, 1
          %s544 = smul.addr %s543, 48
          %s545 = scalar_lea.vmem [#allocation3], %s544
          %s546 = smul.u32 2, %s36
          %s547 = smul.addr %s546, 8
          %s548 = scalar_lea.vmem %s1, %s547
          // Predicated region
          $region61: #{tpu_custom_call.1} parent=59 // pred_check
            _
          $region62: #{tpu_custom_call.1} parent=59 // pred_check_branch
            %550 = sbr.rel (0) target = $region64
          $region63: #{tpu_custom_call.1} parent=59 // pred_region
            // Predicated region
            $region65: #{tpu_custom_call.1} parent=63 // pred_check
              _
            $region66: #{tpu_custom_call.1} parent=63 // pred_check_branch
              %552 = sbr.rel (0) target = $region68
            $region67: #{tpu_custom_call.1} parent=63 // pred_region
              loop: start=0, step=1, limit=1
              $region69: #{tpu_custom_call.1} parent=67 // loop_pre_header
                _
              $region70: #{tpu_custom_call.1} parent=67 // loop_header
                %s554 = sphi 0, %s558
                %p555 = scmp.ge.s32.totalorder %s554, 1
                %s559 = sphi %s548, %s548
                %s560 = sphi %s545, %s545
              $region71: #{tpu_custom_call.1} parent=67 // loop_header_branch
                %557 = sbr.rel (%p555) target = $region75
              $region72: #{tpu_custom_call.1} parent=67 // loop_body
                %v561 = vld [vmem:[%s559] sm:$0xff]
                %562 = vst [vmem:[%s560] sm:$0xff] %v561
                %v563 = vld [vmem:[%s559 + $0x8] sm:$0xff]
                %564 = vst [vmem:[%s560 + $0x8] sm:$0xff] %v563
                %v565 = vld [vmem:[%s559 + $0x20] sm:$0xff]
                %566 = vst [vmem:[%s560 + $0x10] sm:$0xff] %v565
                %v567 = vld [vmem:[%s559 + $0x28] sm:$0xff]
                %568 = vst [vmem:[%s560 + $0x18] sm:$0xff] %v567
                %v569 = vld [vmem:[%s559 + $0x40] sm:$0xff]
                %570 = vst [vmem:[%s560 + $0x20] sm:$0xff] %v569
                %v571 = vld [vmem:[%s559 + $0x48] sm:$0xff]
                %572 = vst [vmem:[%s560 + $0x28] sm:$0xff] %v571
              $region73: #{tpu_custom_call.1} parent=67 // loop_footer
                %s558 = sadd.s32 1, %s554
              $region74: #{tpu_custom_call.1} parent=67 // loop_footer_branch
                %553 = sbr.rel target = $region70
              $region75: #{tpu_custom_call.1} parent=67 // loop_exit
                _
            $region68: #{tpu_custom_call.1} parent=63 // pred_fallthru
              _
            // Predicated region
            $region76: #{tpu_custom_call.1} parent=63 // pred_check
              _
            $region77: #{tpu_custom_call.1} parent=63 // pred_check_branch
              %574 = sbr.rel target = $region79
            $region78: #{tpu_custom_call.1} parent=63 // pred_region
              _
            $region79: #{tpu_custom_call.1} parent=63 // pred_fallthru
              _
          $region64: #{tpu_custom_call.1} parent=59 // pred_fallthru
            _
          %575 = vnop
        $region60: #{tpu_custom_call.1} parent=51 // pred_fallthru
          _
        // Predicated region
        $region80: #{tpu_custom_call.1} parent=51 // pred_check
          %p576 = pneg %p108
        $region81: #{tpu_custom_call.1} parent=51 // pred_check_branch
          %578 = sbr.rel (%p576) target = $region83
        $region82: #{tpu_custom_call.1} parent=51 // pred_region
          %s579 = sand.u32 %s98, 1
          %s580 = sand.u32 %s98, 1
          %s581 = smul.addr %s580, 48
          %s582 = scalar_lea.vmem [#allocation4], %s581
          %s583 = smul.u32 2, %s36
          %s584 = smul.addr %s583, 8
          %s585 = scalar_lea.vmem %s2, %s584
          // Predicated region
          $region84: #{tpu_custom_call.1} parent=82 // pred_check
            _
          $region85: #{tpu_custom_call.1} parent=82 // pred_check_branch
            %587 = sbr.rel (0) target = $region87
          $region86: #{tpu_custom_call.1} parent=82 // pred_region
            // Predicated region
            $region88: #{tpu_custom_call.1} parent=86 // pred_check
              _
            $region89: #{tpu_custom_call.1} parent=86 // pred_check_branch
              %589 = sbr.rel (0) target = $region91
            $region90: #{tpu_custom_call.1} parent=86 // pred_region
              loop: start=0, step=1, limit=1
              $region92: #{tpu_custom_call.1} parent=90 // loop_pre_header
                _
              $region93: #{tpu_custom_call.1} parent=90 // loop_header
                %s591 = sphi 0, %s595
                %p592 = scmp.ge.s32.totalorder %s591, 1
                %s596 = sphi %s585, %s585
                %s597 = sphi %s582, %s582
              $region94: #{tpu_custom_call.1} parent=90 // loop_header_branch
                %594 = sbr.rel (%p592) target = $region98
              $region95: #{tpu_custom_call.1} parent=90 // loop_body
                %v598 = vld [vmem:[%s596] sm:$0xff]
                %599 = vst [vmem:[%s597] sm:$0xff] %v598
                %v600 = vld [vmem:[%s596 + $0x8] sm:$0xff]
                %601 = vst [vmem:[%s597 + $0x8] sm:$0xff] %v600
                %v602 = vld [vmem:[%s596 + $0x20] sm:$0xff]
                %603 = vst [vmem:[%s597 + $0x10] sm:$0xff] %v602
                %v604 = vld [vmem:[%s596 + $0x28] sm:$0xff]
                %605 = vst [vmem:[%s597 + $0x18] sm:$0xff] %v604
                %v606 = vld [vmem:[%s596 + $0x40] sm:$0xff]
                %607 = vst [vmem:[%s597 + $0x20] sm:$0xff] %v606
                %v608 = vld [vmem:[%s596 + $0x48] sm:$0xff]
                %609 = vst [vmem:[%s597 + $0x28] sm:$0xff] %v608
              $region96: #{tpu_custom_call.1} parent=90 // loop_footer
                %s595 = sadd.s32 1, %s591
              $region97: #{tpu_custom_call.1} parent=90 // loop_footer_branch
                %590 = sbr.rel target = $region93
              $region98: #{tpu_custom_call.1} parent=90 // loop_exit
                _
            $region91: #{tpu_custom_call.1} parent=86 // pred_fallthru
              _
            // Predicated region
            $region99: #{tpu_custom_call.1} parent=86 // pred_check
              _
            $region100: #{tpu_custom_call.1} parent=86 // pred_check_branch
              %611 = sbr.rel target = $region102
            $region101: #{tpu_custom_call.1} parent=86 // pred_region
              _
            $region102: #{tpu_custom_call.1} parent=86 // pred_fallthru
              _
          $region87: #{tpu_custom_call.1} parent=82 // pred_fallthru
            _
          %612 = vnop
        $region83: #{tpu_custom_call.1} parent=51 // pred_fallthru
          _
        // Predicated region
        $region103: #{tpu_custom_call.1} parent=51 // pred_check
          %p613 = pneg %p134
        $region104: #{tpu_custom_call.1} parent=51 // pred_check_branch
          %615 = sbr.rel (%p613) target = $region106
        $region105: #{tpu_custom_call.1} parent=51 // pred_region
          %s616 = sand.u32 %s124, 1
          %s617 = sand.u32 %s124, 1
          %s618 = smul.addr %s617, 48
          %s619 = scalar_lea.vmem [#allocation5], %s618
          %s620 = smul.u32 2, %s36
          %s621 = smul.addr %s620, 8
          %s622 = scalar_lea.vmem %s3, %s621
          // Predicated region
          $region107: #{tpu_custom_call.1} parent=105 // pred_check
            _
          $region108: #{tpu_custom_call.1} parent=105 // pred_check_branch
            %624 = sbr.rel (0) target = $region110
          $region109: #{tpu_custom_call.1} parent=105 // pred_region
            // Predicated region
            $region111: #{tpu_custom_call.1} parent=109 // pred_check
              _
            $region112: #{tpu_custom_call.1} parent=109 // pred_check_branch
              %626 = sbr.rel (0) target = $region114
            $region113: #{tpu_custom_call.1} parent=109 // pred_region
              loop: start=0, step=1, limit=1
              $region115: #{tpu_custom_call.1} parent=113 // loop_pre_header
                _
              $region116: #{tpu_custom_call.1} parent=113 // loop_header
                %s628 = sphi 0, %s632
                %p629 = scmp.ge.s32.totalorder %s628, 1
                %s633 = sphi %s622, %s622
                %s634 = sphi %s619, %s619
              $region117: #{tpu_custom_call.1} parent=113 // loop_header_branch
                %631 = sbr.rel (%p629) target = $region121
              $region118: #{tpu_custom_call.1} parent=113 // loop_body
                %v635 = vld [vmem:[%s633] sm:$0xff]
                %636 = vst [vmem:[%s634] sm:$0xff] %v635
                %v637 = vld [vmem:[%s633 + $0x8] sm:$0xff]
                %638 = vst [vmem:[%s634 + $0x8] sm:$0xff] %v637
                %v639 = vld [vmem:[%s633 + $0x20] sm:$0xff]
                %640 = vst [vmem:[%s634 + $0x10] sm:$0xff] %v639
                %v641 = vld [vmem:[%s633 + $0x28] sm:$0xff]
                %642 = vst [vmem:[%s634 + $0x18] sm:$0xff] %v641
                %v643 = vld [vmem:[%s633 + $0x40] sm:$0xff]
                %644 = vst [vmem:[%s634 + $0x20] sm:$0xff] %v643
                %v645 = vld [vmem:[%s633 + $0x48] sm:$0xff]
                %646 = vst [vmem:[%s634 + $0x28] sm:$0xff] %v645
              $region119: #{tpu_custom_call.1} parent=113 // loop_footer
                %s632 = sadd.s32 1, %s628
              $region120: #{tpu_custom_call.1} parent=113 // loop_footer_branch
                %627 = sbr.rel target = $region116
              $region121: #{tpu_custom_call.1} parent=113 // loop_exit
                _
            $region114: #{tpu_custom_call.1} parent=109 // pred_fallthru
              _
            // Predicated region
            $region122: #{tpu_custom_call.1} parent=109 // pred_check
              _
            $region123: #{tpu_custom_call.1} parent=109 // pred_check_branch
              %648 = sbr.rel target = $region125
            $region124: #{tpu_custom_call.1} parent=109 // pred_region
              _
            $region125: #{tpu_custom_call.1} parent=109 // pred_fallthru
              _
          $region110: #{tpu_custom_call.1} parent=105 // pred_fallthru
            _
          %649 = vnop
        $region106: #{tpu_custom_call.1} parent=51 // pred_fallthru
          _
        // Predicated region
        $region126: #{tpu_custom_call.1} parent=51 // pred_check
          %p650 = pneg %p160
        $region127: #{tpu_custom_call.1} parent=51 // pred_check_branch
          %652 = sbr.rel (%p650) target = $region129
        $region128: #{tpu_custom_call.1} parent=51 // pred_region
          %s653 = sand.u32 %s150, 1
          %s654 = sand.u32 %s150, 1
          %s655 = smul.addr %s654, 48
          %s656 = scalar_lea.vmem [#allocation6], %s655
          %s657 = smul.u32 2, %s36
          %s658 = smul.addr %s657, 8
          %s659 = scalar_lea.vmem %s4, %s658
          // Predicated region
          $region130: #{tpu_custom_call.1} parent=128 // pred_check
            _
          $region131: #{tpu_custom_call.1} parent=128 // pred_check_branch
            %661 = sbr.rel (0) target = $region133
          $region132: #{tpu_custom_call.1} parent=128 // pred_region
            // Predicated region
            $region134: #{tpu_custom_call.1} parent=132 // pred_check
              _
            $region135: #{tpu_custom_call.1} parent=132 // pred_check_branch
              %663 = sbr.rel (0) target = $region137
            $region136: #{tpu_custom_call.1} parent=132 // pred_region
              loop: start=0, step=1, limit=1
              $region138: #{tpu_custom_call.1} parent=136 // loop_pre_header
                _
              $region139: #{tpu_custom_call.1} parent=136 // loop_header
                %s665 = sphi 0, %s669
                %p666 = scmp.ge.s32.totalorder %s665, 1
                %s670 = sphi %s659, %s659
                %s671 = sphi %s656, %s656
              $region140: #{tpu_custom_call.1} parent=136 // loop_header_branch
                %668 = sbr.rel (%p666) target = $region144
              $region141: #{tpu_custom_call.1} parent=136 // loop_body
                %v672 = vld [vmem:[%s670] sm:$0xff]
                %673 = vst [vmem:[%s671] sm:$0xff] %v672
                %v674 = vld [vmem:[%s670 + $0x8] sm:$0xff]
                %675 = vst [vmem:[%s671 + $0x8] sm:$0xff] %v674
                %v676 = vld [vmem:[%s670 + $0x20] sm:$0xff]
                %677 = vst [vmem:[%s671 + $0x10] sm:$0xff] %v676
                %v678 = vld [vmem:[%s670 + $0x28] sm:$0xff]
                %679 = vst [vmem:[%s671 + $0x18] sm:$0xff] %v678
                %v680 = vld [vmem:[%s670 + $0x40] sm:$0xff]
                %681 = vst [vmem:[%s671 + $0x20] sm:$0xff] %v680
                %v682 = vld [vmem:[%s670 + $0x48] sm:$0xff]
                %683 = vst [vmem:[%s671 + $0x28] sm:$0xff] %v682
              $region142: #{tpu_custom_call.1} parent=136 // loop_footer
                %s669 = sadd.s32 1, %s665
              $region143: #{tpu_custom_call.1} parent=136 // loop_footer_branch
                %664 = sbr.rel target = $region139
              $region144: #{tpu_custom_call.1} parent=136 // loop_exit
                _
            $region137: #{tpu_custom_call.1} parent=132 // pred_fallthru
              _
            // Predicated region
            $region145: #{tpu_custom_call.1} parent=132 // pred_check
              _
            $region146: #{tpu_custom_call.1} parent=132 // pred_check_branch
              %685 = sbr.rel target = $region148
            $region147: #{tpu_custom_call.1} parent=132 // pred_region
              _
            $region148: #{tpu_custom_call.1} parent=132 // pred_fallthru
              _
          $region133: #{tpu_custom_call.1} parent=128 // pred_fallthru
            _
          %686 = vnop
        $region129: #{tpu_custom_call.1} parent=51 // pred_fallthru
          _
      $region52: #{tpu_custom_call.1} parent=5 // pred_fallthru
        _
      %p687 = scmp.le.s32.totalorder 1, %s36
      %p688 = scmp.lt.s32.totalorder %s36, 3
      %p689 = pnand %p687, %p688
      %p690 = pneg %p689
      // Predicated region
      $region149: #{tpu_custom_call.1} parent=5 // pred_check
        _
      $region150: #{tpu_custom_call.1} parent=5 // pred_check_branch
        %692 = sbr.rel (%p689) target = $region152
      $region151: #{tpu_custom_call.1} parent=5 // pred_region
        %s693 = ssub.s32 %s36, 1
        %s694 = sand.u32 %s75, 1
        %s695 = sand.u32 %s75, 1
        %s696 = smul.addr %s695, 48
        %s697 = scalar_lea.vmem [#allocation3], %s696
        // Predicated region
        $region153: #{tpu_custom_call.1} parent=151 // pred_check
          %p698 = pneg %p88
        $region154: #{tpu_custom_call.1} parent=151 // pred_check_branch
          %700 = sbr.rel (%p698) target = $region156
        $region155: #{tpu_custom_call.1} parent=151 // pred_region
          _
        $region156: #{tpu_custom_call.1} parent=151 // pred_fallthru
          _
        %s701 = sand.u32 %s101, 1
        %s702 = sand.u32 %s101, 1
        %s703 = smul.addr %s702, 48
        %s704 = scalar_lea.vmem [#allocation4], %s703
        // Predicated region
        $region157: #{tpu_custom_call.1} parent=151 // pred_check
          %p705 = pneg %p114
        $region158: #{tpu_custom_call.1} parent=151 // pred_check_branch
          %707 = sbr.rel (%p705) target = $region160
        $region159: #{tpu_custom_call.1} parent=151 // pred_region
          _
        $region160: #{tpu_custom_call.1} parent=151 // pred_fallthru
          _
        %s708 = sand.u32 %s127, 1
        %s709 = sand.u32 %s127, 1
        %s710 = smul.addr %s709, 48
        %s711 = scalar_lea.vmem [#allocation5], %s710
        // Predicated region
        $region161: #{tpu_custom_call.1} parent=151 // pred_check
          %p712 = pneg %p140
        $region162: #{tpu_custom_call.1} parent=151 // pred_check_branch
          %714 = sbr.rel (%p712) target = $region164
        $region163: #{tpu_custom_call.1} parent=151 // pred_region
          _
        $region164: #{tpu_custom_call.1} parent=151 // pred_fallthru
          _
        %s715 = sand.u32 %s153, 1
        %s716 = sand.u32 %s153, 1
        %s717 = smul.addr %s716, 48
        %s718 = scalar_lea.vmem [#allocation6], %s717
        // Predicated region
        $region165: #{tpu_custom_call.1} parent=151 // pred_check
          %p719 = pneg %p166
        $region166: #{tpu_custom_call.1} parent=151 // pred_check_branch
          %721 = sbr.rel (%p719) target = $region168
        $region167: #{tpu_custom_call.1} parent=151 // pred_region
          _
        $region168: #{tpu_custom_call.1} parent=151 // pred_fallthru
          _
        %s722 = smul.u32 2, %s41
        %p723 = scmp.lt.s32.totalorder %s722, 3
        %s724 = scalar_select %p723, %s722, 3
        %s725 = scalar_lea.vmem %s0, %s724
        %p726 = pneg %p62
        %p727 = pneg %p59
        %s728 = sand.u32 %s75, 1
        %s729 = sand.u32 %s75, 1
        %s730 = smul.addr %s729, 48
        %s731 = scalar_lea.vmem [#allocation3], %s730
        %p732 = pneg %p88
        %p733 = pneg %p85
        %s734 = sand.u32 %s101, 1
        %s735 = sand.u32 %s101, 1
        %s736 = smul.addr %s735, 48
        %s737 = scalar_lea.vmem [#allocation4], %s736
        %p738 = pneg %p114
        %p739 = pneg %p111
        %s740 = sand.u32 %s127, 1
        %s741 = sand.u32 %s127, 1
        %s742 = smul.addr %s741, 48
        %s743 = scalar_lea.vmem [#allocation5], %s742
        %p744 = pneg %p140
        %p745 = pneg %p137
        %s746 = sand.u32 %s153, 1
        %s747 = sand.u32 %s153, 1
        %s748 = smul.addr %s747, 48
        %s749 = scalar_lea.vmem [#allocation6], %s748
        %p750 = pneg %p166
        %p751 = pneg %p163
        %p752 = pneg %p187
        %p753 = pneg %p184
        %p754 = pneg %p208
        %p755 = pneg %p205
        %p756 = pneg %p229
        %p757 = pneg %p226
        %p758 = pneg %p250
        %p759 = pneg %p247
        %p760 = pneg %p271
        %p761 = pneg %p268
        %p762 = pneg %p292
        %p763 = pneg %p289
        %p764 = pneg %p313
        %p765 = pneg %p310
        %p766 = pneg %p334
        %p767 = pneg %p331
        %p768 = pneg %p355
        %p769 = pneg %p352
        %p770 = pneg %p381
        %p771 = pneg %p378
        %s772 = sand.u32 %s368, 1
        %s773 = scalar_lea.sflag [#allocation8], %s772
        %s774 = sand.u32 %s368, 1
        %s775 = smul.addr %s774, 2
        %s776 = scalar_lea.vmem [#allocation7], %s775
        %p777 = pneg %p407
        %p778 = pneg %p404
        %s779 = sand.u32 %s41, 1
        %s780 = scalar_lea.sflag [#allocation10], %s779
        %s781 = sand.u32 %s394, 1
        %s782 = smul.addr %s781, 48
        %s783 = scalar_lea.vmem [#allocation9], %s782
        %p784 = pneg %p433
        %p785 = pneg %p430
        %s786 = sand.u32 %s41, 1
        %s787 = scalar_lea.sflag [#allocation10], %s786
        %s788 = sand.u32 %s420, 1
        %s789 = smul.addr %s788, 48
        %s790 = scalar_lea.vmem [#allocation11], %s789
        %p791 = pneg %p459
        %p792 = pneg %p456
        %s793 = sand.u32 %s41, 1
        %s794 = scalar_lea.sflag [#allocation13], %s793
        %s795 = sand.u32 %s446, 1
        %s796 = smul.addr %s795, 48
        %s797 = scalar_lea.vmem [#allocation12], %s796
        %p798 = pneg %p485
        %p799 = pneg %p482
        %s800 = sand.u32 %s41, 1
        %s801 = scalar_lea.sflag [#allocation13], %s800
        %s802 = sand.u32 %s472, 1
        %s803 = smul.addr %s802, 48
        %s804 = scalar_lea.vmem [#allocation14], %s803
        %s805 = smul.u32 2, %s41
        %p806 = scmp.lt.s32.totalorder %s805, 3
        %s807 = scalar_select %p806, %s805, 3
        %s808 = scalar_lea.vmem %s0, %s807
        %s809 = smul.u32 2, %s41
        %s810 = smul.u32 2, %s41
        %s811 = smul.u32 2, %s41
        %s812 = smul.u32 2, %s41
        %s813 = smul.u32 2, %s41
        %s814 = smul.u32 2, %s41
        %s815 = smul.u32 2, %s41
        %s816 = smul.u32 2, %s41
        %s817 = smul.u32 2, %s41
        %s818 = smul.u32 2, %s41
        %v819 = vld [vmem:[%s808] sm:$0x3]
        %v820 = vld [vmem:[%s5] sm:$0xff]
        %v821 = vld [vmem:[%s5 + $0x8] sm:$0xff]
        %v822 = vld [vmem:[%s5 + $0x10] sm:$0xff]
        %v823 = vld [vmem:[%s5 + $0x18] sm:$0xff]
        %v824 = vld [vmem:[%s5 + $0x20] sm:$0xff]
        %v825 = vld [vmem:[%s5 + $0x28] sm:$0xff]
        %v826 = vld [vmem:[%s5 + $0x30] sm:$0xff]
        %v827 = vld [vmem:[%s5 + $0x38] sm:$0xff]
        %v828 = vld [vmem:[%s5 + $0x40] sm:$0xff]
        %v829 = vld [vmem:[%s5 + $0x48] sm:$0xff]
        %v830 = vld [vmem:[%s5 + $0x50] sm:$0xff]
        %v831 = vld [vmem:[%s5 + $0x58] sm:$0xff]
        %833 = vset.pattern.permute.xlu0 0
        %834 = vperm.xlu0 %833, %v820
        %v835 = vpop.permute.xlu0 %834
        %838 = vset.pattern.permute.xlu0 0
        %839 = vperm.xlu0 %838, %v821
        %v840 = vpop.permute.xlu0 %839
        %843 = vset.pattern.permute.xlu0 0
        %844 = vperm.xlu0 %843, %v822
        %v845 = vpop.permute.xlu0 %844
        %848 = vset.pattern.permute.xlu0 0
        %849 = vperm.xlu0 %848, %v823
        %v850 = vpop.permute.xlu0 %849
        %853 = vset.pattern.permute.xlu0 0
        %854 = vperm.xlu0 %853, %v824
        %v855 = vpop.permute.xlu0 %854
        %858 = vset.pattern.permute.xlu0 0
        %859 = vperm.xlu0 %858, %v825
        %v860 = vpop.permute.xlu0 %859
        %863 = vset.pattern.permute.xlu0 0
        %864 = vperm.xlu0 %863, %v826
        %v865 = vpop.permute.xlu0 %864
        %868 = vset.pattern.permute.xlu0 0
        %869 = vperm.xlu0 %868, %v827
        %v870 = vpop.permute.xlu0 %869
        %873 = vset.pattern.permute.xlu0 0
        %874 = vperm.xlu0 %873, %v828
        %v875 = vpop.permute.xlu0 %874
        %878 = vset.pattern.permute.xlu0 0
        %879 = vperm.xlu0 %878, %v829
        %v880 = vpop.permute.xlu0 %879
        %883 = vset.pattern.permute.xlu0 0
        %884 = vperm.xlu0 %883, %v830
        %v885 = vpop.permute.xlu0 %884
        %888 = vset.pattern.permute.xlu0 0
        %889 = vperm.xlu0 %888, %v831
        %v890 = vpop.permute.xlu0 %889
        %v893 = vlaneseq
        %v894 = vshrl.u32 %v893, 7
        %v895 = vsub.s32 0, %v894
        %v896 = vrot.slane %v819, %v895
        %v897 = vlaneseq
        %v898 = vshrl.u32 %v897, 7
        %v899 = vsub.s32 1, %v898
        %v900 = vrot.slane %v819, %v899
        %v903 = vmul.f32 %v835, %v896
        %v904 = vmul.f32 %v835, %v900
        %v905 = vmul.f32 %v840, %v896
        %v906 = vmul.f32 %v840, %v900
        %v907 = vmul.f32 %v845, %v896
        %v908 = vmul.f32 %v845, %v900
        %v909 = vmul.f32 %v850, %v896
        %v910 = vmul.f32 %v850, %v900
        %v911 = vmul.f32 %v855, %v896
        %v912 = vmul.f32 %v855, %v900
        %v913 = vmul.f32 %v860, %v896
        %v914 = vmul.f32 %v860, %v900
        %v915 = vmul.f32 %v865, %v896
        %v916 = vmul.f32 %v865, %v900
        %v917 = vmul.f32 %v870, %v896
        %v918 = vmul.f32 %v870, %v900
        %v919 = vmul.f32 %v875, %v896
        %v920 = vmul.f32 %v875, %v900
        %v921 = vmul.f32 %v880, %v896
        %v922 = vmul.f32 %v880, %v900
        %v923 = vmul.f32 %v885, %v896
        %v924 = vmul.f32 %v885, %v900
        %v925 = vmul.f32 %v890, %v896
        %v926 = vmul.f32 %v890, %v900
        %v927 = vld [vmem:[%s697] sm:$0xff]
        %v928 = vld [vmem:[%s697 + $0x8] sm:$0xff]
        %v929 = vld [vmem:[%s697 + $0x10] sm:$0xff]
        %v930 = vld [vmem:[%s697 + $0x18] sm:$0xff]
        %v931 = vld [vmem:[%s697 + $0x20] sm:$0xf]
        %v932 = vld [vmem:[%s697 + $0x28] sm:$0xf]
        %v933 = vld [vmem:[%s704] sm:$0xff]
        %v934 = vld [vmem:[%s704 + $0x8] sm:$0xff]
        %v935 = vld [vmem:[%s704 + $0x10] sm:$0xff]
        %v936 = vld [vmem:[%s704 + $0x18] sm:$0xff]
        %v937 = vld [vmem:[%s704 + $0x20] sm:$0xf]
        %v938 = vld [vmem:[%s704 + $0x28] sm:$0xf]
        %v939 = vld [vmem:[%s711] sm:$0xff]
        %v940 = vld [vmem:[%s711 + $0x8] sm:$0xff]
        %v941 = vld [vmem:[%s711 + $0x10] sm:$0xff]
        %v942 = vld [vmem:[%s711 + $0x18] sm:$0xff]
        %v943 = vld [vmem:[%s711 + $0x20] sm:$0xf]
        %v944 = vld [vmem:[%s711 + $0x28] sm:$0xf]
        %v945 = vld [vmem:[%s718] sm:$0xff]
        %v946 = vld [vmem:[%s718 + $0x8] sm:$0xff]
        %v947 = vld [vmem:[%s718 + $0x10] sm:$0xff]
        %v948 = vld [vmem:[%s718 + $0x18] sm:$0xff]
        %v949 = vld [vmem:[%s718 + $0x20] sm:$0xf]
        %v950 = vld [vmem:[%s718 + $0x28] sm:$0xf]
        %v951 = vld [vmem:[%s7] sm:$0xff]
        %v952 = vld [vmem:[%s7 + $0x8] sm:$0xff]
        %v953 = vld [vmem:[%s7 + $0x10] sm:$0xff]
        %v954 = vld [vmem:[%s7 + $0x18] sm:$0xff]
        %v955 = vld [vmem:[%s7 + $0x20] sm:$0xff]
        %v956 = vld [vmem:[%s7 + $0x28] sm:$0xff]
        %v957 = vld [vmem:[%s7 + $0x30] sm:$0xff]
        %v958 = vld [vmem:[%s7 + $0x38] sm:$0xff]
        %v959 = vld [vmem:[%s7 + $0x40] sm:$0xff]
        %v960 = vld [vmem:[%s7 + $0x48] sm:$0xff]
        %v961 = vld [vmem:[%s7 + $0x50] sm:$0xff]
        %v962 = vld [vmem:[%s7 + $0x58] sm:$0xff]
        %vm963 = vcmask 162816
        %v965 = vsel %vm963, %v951, 0
        %v968 = vsel %vm963, %v952, 0
        %v971 = vsel %vm963, %v953, 0
        %v974 = vsel %vm963, %v954, 0
        %v977 = vsel %vm963, %v955, 0
        %v980 = vsel %vm963, %v956, 0
        %v983 = vsel %vm963, %v957, 0
        %v986 = vsel %vm963, %v958, 0
        %v989 = vsel %vm963, %v959, 0
        %v992 = vsel %vm963, %v960, 0
        %v995 = vsel %vm963, %v961, 0
        %v998 = vsel %vm963, %v962, 0
        %vm1000 = vcmask 1043456
        %v1002 = vsel %vm1000, %v931, 0
        %v1005 = vsel %vm1000, %v932, 0
        %1007 = vmatprep.subr.mxu0 %v928
        %1008 = vmatpush1.msra.mxu0 %v927
        %1009 = vmatprep.subr.mxu0 %v930
        %1010 = vmatpush1.msra.mxu0 %v929
        %1011 = vmatprep.subr.mxu0 %v1005
        %1012 = vmatpush1.msra.mxu0 %v1002
        %1013 = vmatprep.subr.mxu0 0.0
        %1014 = vmatpush1.msra.mxu0 0.0
        %1015 = vmatprep.subr.mxu0 0.0
        %1016 = vmatpush1.msra.mxu0 0.0
        %1017 = vmatprep.subr.mxu0 0.0
        %1018 = vmatpush1.msra.mxu0 0.0
        %1019 = vmatprep.subr.mxu0 0.0
        %1020 = vmatpush1.msra.mxu0 0.0
        %1021 = vmatprep.subr.mxu0 0.0
        %1022 = vmatpush1.msra.mxu0 0.0
        %1023 = vmatprep.subr.mxu0 0.0
        %1024 = vmatpush1.msra.mxu0 0.0
        %1025 = vmatprep.subr.mxu0 0.0
        %1026 = vmatpush1.msra.mxu0 0.0
        %1027 = vmatprep.subr.mxu0 0.0
        %1028 = vmatpush1.msra.mxu0 0.0
        %1029 = vmatprep.subr.mxu0 0.0
        %1030 = vmatpush1.msra.mxu0 0.0
        %1031 = vmatprep.subr.mxu0 0.0
        %1032 = vmatpush1.msra.mxu0 0.0
        %1033 = vmatprep.subr.mxu0 0.0
        %1034 = vmatpush1.msra.mxu0 0.0
        %1035 = vmatprep.subr.mxu0 0.0
        %1036 = vmatpush1.msra.mxu0 0.0
        %1037 = vmatprep.subr.mxu0 0.0
        %1038 = vmatpush1.msra.mxu0 0.0
        %1039 = vmatprep.subr.mxu0 0.0
        %1040 = vmatpush1.msra.mxu0 0.0
        %1041 = vmatprep.subr.mxu0 0.0
        %1042 = vmatpush1.msra.mxu0 0.0
        %1043 = vmatprep.subr.mxu0 0.0
        %1044 = vmatpush1.msra.mxu0 0.0
        %1045 = vmatprep.subr.mxu0 0.0
        %1046 = vmatpush1.msra.mxu0 0.0
        %1047 = vmatprep.subr.mxu0 0.0
        %1048 = vmatpush1.msra.mxu0 0.0
        %1049 = vmatprep.subr.mxu0 0.0
        %1050 = vmatpush1.msra.mxu0 0.0
        %1051 = vmatprep.subr.mxu0 0.0
        %1052 = vmatpush1.msra.mxu0 0.0
        %1053 = vmatprep.subr.mxu0 0.0
        %1054 = vmatpush1.msra.mxu0 0.0
        %1055 = vmatprep.subr.mxu0 0.0
        %1056 = vmatpush1.msra.mxu0 0.0
        %1057 = vmatprep.subr.mxu0 0.0
        %1058 = vmatpush1.msra.mxu0 0.0
        %1059 = vmatprep.subr.mxu0 0.0
        %1060 = vmatpush1.msra.mxu0 0.0
        %1061 = vmatprep.subr.mxu0 0.0
        %1062 = vmatpush1.msra.mxu0 0.0
        %1063 = vmatprep.subr.mxu0 0.0
        %1064 = vmatpush1.msra.mxu0 0.0
        %1065 = vmatprep.subr.mxu0 0.0
        %1066 = vmatpush1.msra.mxu0 0.0
        %1067 = vmatprep.subr.mxu0 0.0
        %1068 = vmatpush1.msra.mxu0 0.0
        %1069 = vmatprep.subr.mxu0 0.0
        %1070 = vmatpush1.msra.mxu0 0.0
        %1071 = vmatprep.mubr.f32.mxu0 0.0
        %1072 = vmatmul.mubr.f32.gmra.mrb[0].mxu0 %v965
        %v1073 = vpop.f32.mrb[0].mxu0
        %v1074 = vadd.f32 0.0, %v1073
        %v1075 = vpop.f32.mrb[0].mxu0
        %v1076 = vadd.f32 0.0, %v1075
        %1077 = vmatprep.mubr.f32.mxu0 0.0
        %1078 = vmatmul.mubr.f32.gmra.mrb[0].mxu0 %v968
        %v1079 = vpop.f32.mrb[0].mxu0
        %v1080 = vadd.f32 0.0, %v1079
        %v1081 = vpop.f32.mrb[0].mxu0
        %v1082 = vadd.f32 0.0, %v1081
        %1083 = vmatprep.mubr.f32.mxu0 0.0
        %1084 = vmatmul.mubr.f32.gmra.mrb[0].mxu0 %v971
        %v1085 = vpop.f32.mrb[0].mxu0
        %v1086 = vadd.f32 0.0, %v1085
        %v1087 = vpop.f32.mrb[0].mxu0
        %v1088 = vadd.f32 0.0, %v1087
        %1089 = vmatprep.mubr.f32.mxu0 0.0
        %1090 = vmatmul.mubr.f32.gmra.mrb[0].mxu0 %v974
        %v1091 = vpop.f32.mrb[0].mxu0
        %v1092 = vadd.f32 0.0, %v1091
        %v1093 = vpop.f32.mrb[0].mxu0
        %v1094 = vadd.f32 0.0, %v1093
        %1095 = vmatprep.mubr.f32.mxu0 0.0
        %1096 = vmatmul.mubr.f32.gmra.mrb[0].mxu0 %v977
        %v1097 = vpop.f32.mrb[0].mxu0
        %v1098 = vadd.f32 0.0, %v1097
        %v1099 = vpop.f32.mrb[0].mxu0
        %v1100 = vadd.f32 0.0, %v1099
        %1101 = vmatprep.mubr.f32.mxu0 0.0
        %1102 = vmatmul.mubr.f32.gmra.mrb[0].mxu0 %v980
        %v1103 = vpop.f32.mrb[0].mxu0
        %v1104 = vadd.f32 0.0, %v1103
        %v1105 = vpop.f32.mrb[0].mxu0
        %v1106 = vadd.f32 0.0, %v1105
        %1107 = vmatprep.mubr.f32.mxu0 0.0
        %1108 = vmatmul.mubr.f32.gmra.mrb[0].mxu0 %v983
        %v1109 = vpop.f32.mrb[0].mxu0
        %v1110 = vadd.f32 0.0, %v1109
        %v1111 = vpop.f32.mrb[0].mxu0
        %v1112 = vadd.f32 0.0, %v1111
        %1113 = vmatprep.mubr.f32.mxu0 0.0
        %1114 = vmatmul.mubr.f32.gmra.mrb[0].mxu0 %v986
        %v1115 = vpop.f32.mrb[0].mxu0
        %v1116 = vadd.f32 0.0, %v1115
        %v1117 = vpop.f32.mrb[0].mxu0
        %v1118 = vadd.f32 0.0, %v1117
        %1119 = vmatprep.mubr.f32.mxu0 0.0
        %1120 = vmatmul.mubr.f32.gmra.mrb[0].mxu0 %v989
        %v1121 = vpop.f32.mrb[0].mxu0
        %v1122 = vadd.f32 0.0, %v1121
        %v1123 = vpop.f32.mrb[0].mxu0
        %v1124 = vadd.f32 0.0, %v1123
        %1125 = vmatprep.mubr.f32.mxu0 0.0
        %1126 = vmatmul.mubr.f32.gmra.mrb[0].mxu0 %v992
        %v1127 = vpop.f32.mrb[0].mxu0
        %v1128 = vadd.f32 0.0, %v1127
        %v1129 = vpop.f32.mrb[0].mxu0
        %v1130 = vadd.f32 0.0, %v1129
        %1131 = vmatprep.mubr.f32.mxu0 0.0
        %1132 = vmatmul.mubr.f32.gmra.mrb[0].mxu0 %v995
        %v1133 = vpop.f32.mrb[0].mxu0
        %v1134 = vadd.f32 0.0, %v1133
        %v1135 = vpop.f32.mrb[0].mxu0
        %v1136 = vadd.f32 0.0, %v1135
        %1137 = vmatprep.mubr.f32.mxu0 0.0
        %1138 = vmatmul.mubr.f32.gmra.mrb[0].mxu0 %v998
        %v1139 = vpop.f32.mrb[0].mxu0
        %v1140 = vadd.f32 0.0, %v1139
        %v1141 = vpop.f32.mrb[0].mxu0
        %v1142 = vadd.f32 0.0, %v1141
        %1143 = vdwg.mxu0
        %v1144 = vadd.f32 %v903, %v1074
        %v1145 = vadd.f32 %v904, %v1076
        %v1146 = vadd.f32 %v905, %v1080
        %v1147 = vadd.f32 %v906, %v1082
        %v1148 = vadd.f32 %v907, %v1086
        %v1149 = vadd.f32 %v908, %v1088
        %v1150 = vadd.f32 %v909, %v1092
        %v1151 = vadd.f32 %v910, %v1094
        %v1152 = vadd.f32 %v911, %v1098
        %v1153 = vadd.f32 %v912, %v1100
        %v1154 = vadd.f32 %v913, %v1104
        %v1155 = vadd.f32 %v914, %v1106
        %v1156 = vadd.f32 %v915, %v1110
        %v1157 = vadd.f32 %v916, %v1112
        %v1158 = vadd.f32 %v917, %v1116
        %v1159 = vadd.f32 %v918, %v1118
        %v1160 = vadd.f32 %v919, %v1122
        %v1161 = vadd.f32 %v920, %v1124
        %v1162 = vadd.f32 %v921, %v1128
        %v1163 = vadd.f32 %v922, %v1130
        %v1164 = vadd.f32 %v923, %v1134
        %v1165 = vadd.f32 %v924, %v1136
        %v1166 = vadd.f32 %v925, %v1140
        %v1167 = vadd.f32 %v926, %v1142
        %v1168 = vld [vmem:[%s8] sm:$0xff]
        %v1169 = vld [vmem:[%s8 + $0x8] sm:$0xff]
        %v1170 = vld [vmem:[%s8 + $0x10] sm:$0xff]
        %v1171 = vld [vmem:[%s8 + $0x18] sm:$0xff]
        %v1172 = vld [vmem:[%s8 + $0x20] sm:$0xff]
        %v1173 = vld [vmem:[%s8 + $0x28] sm:$0xff]
        %v1174 = vld [vmem:[%s8 + $0x30] sm:$0xff]
        %v1175 = vld [vmem:[%s8 + $0x38] sm:$0xff]
        %v1176 = vld [vmem:[%s8 + $0x40] sm:$0xff]
        %v1177 = vld [vmem:[%s8 + $0x48] sm:$0xff]
        %v1178 = vld [vmem:[%s8 + $0x50] sm:$0xff]
        %v1179 = vld [vmem:[%s8 + $0x58] sm:$0xff]
        %1181 = vset.pattern.permute.xlu0 0
        %1182 = vperm.xlu0 %1181, %v1168
        %v1183 = vpop.permute.xlu0 %1182
        %1186 = vset.pattern.permute.xlu0 0
        %1187 = vperm.xlu0 %1186, %v1169
        %v1188 = vpop.permute.xlu0 %1187
        %1191 = vset.pattern.permute.xlu0 0
        %1192 = vperm.xlu0 %1191, %v1170
        %v1193 = vpop.permute.xlu0 %1192
        %1196 = vset.pattern.permute.xlu0 0
        %1197 = vperm.xlu0 %1196, %v1171
        %v1198 = vpop.permute.xlu0 %1197
        %1201 = vset.pattern.permute.xlu0 0
        %1202 = vperm.xlu0 %1201, %v1172
        %v1203 = vpop.permute.xlu0 %1202
        %1206 = vset.pattern.permute.xlu0 0
        %1207 = vperm.xlu0 %1206, %v1173
        %v1208 = vpop.permute.xlu0 %1207
        %1211 = vset.pattern.permute.xlu0 0
        %1212 = vperm.xlu0 %1211, %v1174
        %v1213 = vpop.permute.xlu0 %1212
        %1216 = vset.pattern.permute.xlu0 0
        %1217 = vperm.xlu0 %1216, %v1175
        %v1218 = vpop.permute.xlu0 %1217
        %1221 = vset.pattern.permute.xlu0 0
        %1222 = vperm.xlu0 %1221, %v1176
        %v1223 = vpop.permute.xlu0 %1222
        %1226 = vset.pattern.permute.xlu0 0
        %1227 = vperm.xlu0 %1226, %v1177
        %v1228 = vpop.permute.xlu0 %1227
        %1231 = vset.pattern.permute.xlu0 0
        %1232 = vperm.xlu0 %1231, %v1178
        %v1233 = vpop.permute.xlu0 %1232
        %1236 = vset.pattern.permute.xlu0 0
        %1237 = vperm.xlu0 %1236, %v1179
        %v1238 = vpop.permute.xlu0 %1237
        %v1240 = vadd.f32 %v1144, %v1183
        %v1241 = vadd.f32 %v1145, %v1183
        %v1242 = vadd.f32 %v1146, %v1188
        %v1243 = vadd.f32 %v1147, %v1188
        %v1244 = vadd.f32 %v1148, %v1193
        %v1245 = vadd.f32 %v1149, %v1193
        %v1246 = vadd.f32 %v1150, %v1198
        %v1247 = vadd.f32 %v1151, %v1198
        %v1248 = vadd.f32 %v1152, %v1203
        %v1249 = vadd.f32 %v1153, %v1203
        %v1250 = vadd.f32 %v1154, %v1208
        %v1251 = vadd.f32 %v1155, %v1208
        %v1252 = vadd.f32 %v1156, %v1213
        %v1253 = vadd.f32 %v1157, %v1213
        %v1254 = vadd.f32 %v1158, %v1218
        %v1255 = vadd.f32 %v1159, %v1218
        %v1256 = vadd.f32 %v1160, %v1223
        %v1257 = vadd.f32 %v1161, %v1223
        %v1258 = vadd.f32 %v1162, %v1228
        %v1259 = vadd.f32 %v1163, %v1228
        %v1260 = vadd.f32 %v1164, %v1233
        %v1261 = vadd.f32 %v1165, %v1233
        %v1262 = vadd.f32 %v1166, %v1238
        %v1263 = vadd.f32 %v1167, %v1238
        %v1264 = vmul.f32 %v1240, 0.5
        %v1265 = vmul.f32 %v1241, 0.5
        %v1266 = vmul.f32 %v1242, 0.5
        %v1267 = vmul.f32 %v1243, 0.5
        %v1268 = vmul.f32 %v1244, 0.5
        %v1269 = vmul.f32 %v1245, 0.5
        %v1270 = vtanh.pop %v1264
        %v1271 = vtanh.pop %v1265
        %v1272 = vtanh.pop %v1266
        %v1273 = vtanh.pop %v1267
        %v1274 = vtanh.pop %v1268
        %v1275 = vtanh.pop %v1269
        %v1276 = vmul.f32 %v1270, 0.5
        %v1277 = vmul.f32 %v1271, 0.5
        %v1278 = vmul.f32 %v1272, 0.5
        %v1279 = vmul.f32 %v1273, 0.5
        %v1280 = vmul.f32 %v1274, 0.5
        %v1281 = vmul.f32 %v1275, 0.5
        %v1282 = vadd.f32 %v1276, 0.5
        %v1283 = vadd.f32 %v1277, 0.5
        %v1284 = vadd.f32 %v1278, 0.5
        %v1285 = vadd.f32 %v1279, 0.5
        %v1286 = vadd.f32 %v1280, 0.5
        %v1287 = vadd.f32 %v1281, 0.5
        %v1288 = vmul.f32 %v1246, 0.5
        %v1289 = vmul.f32 %v1247, 0.5
        %v1290 = vmul.f32 %v1248, 0.5
        %v1291 = vmul.f32 %v1249, 0.5
        %v1292 = vmul.f32 %v1250, 0.5
        %v1293 = vmul.f32 %v1251, 0.5
        %v1294 = vtanh.pop %v1288
        %v1295 = vtanh.pop %v1289
        %v1296 = vtanh.pop %v1290
        %v1297 = vtanh.pop %v1291
        %v1298 = vtanh.pop %v1292
        %v1299 = vtanh.pop %v1293
        %v1300 = vmul.f32 %v1294, 0.5
        %v1301 = vmul.f32 %v1295, 0.5
        %v1302 = vmul.f32 %v1296, 0.5
        %v1303 = vmul.f32 %v1297, 0.5
        %v1304 = vmul.f32 %v1298, 0.5
        %v1305 = vmul.f32 %v1299, 0.5
        %v1306 = vadd.f32 %v1300, 0.5
        %v1307 = vadd.f32 %v1301, 0.5
        %v1308 = vadd.f32 %v1302, 0.5
        %v1309 = vadd.f32 %v1303, 0.5
        %v1310 = vadd.f32 %v1304, 0.5
        %v1311 = vadd.f32 %v1305, 0.5
        %v1312 = vtanh.pop %v1252
        %v1313 = vtanh.pop %v1253
        %v1314 = vtanh.pop %v1254
        %v1315 = vtanh.pop %v1255
        %v1316 = vtanh.pop %v1256
        %v1317 = vtanh.pop %v1257
        %v1318 = vmul.f32 %v1258, 0.5
        %v1319 = vmul.f32 %v1259, 0.5
        %v1320 = vmul.f32 %v1260, 0.5
        %v1321 = vmul.f32 %v1261, 0.5
        %v1322 = vmul.f32 %v1262, 0.5
        %v1323 = vmul.f32 %v1263, 0.5
        %v1324 = vtanh.pop %v1318
        %v1325 = vtanh.pop %v1319
        %v1326 = vtanh.pop %v1320
        %v1327 = vtanh.pop %v1321
        %v1328 = vtanh.pop %v1322
        %v1329 = vtanh.pop %v1323
        %v1330 = vmul.f32 %v1324, 0.5
        %v1331 = vmul.f32 %v1325, 0.5
        %v1332 = vmul.f32 %v1326, 0.5
        %v1333 = vmul.f32 %v1327, 0.5
        %v1334 = vmul.f32 %v1328, 0.5
        %v1335 = vmul.f32 %v1329, 0.5
        %v1336 = vadd.f32 %v1330, 0.5
        %v1337 = vadd.f32 %v1331, 0.5
        %v1338 = vadd.f32 %v1332, 0.5
        %v1339 = vadd.f32 %v1333, 0.5
        %v1340 = vadd.f32 %v1334, 0.5
        %v1341 = vadd.f32 %v1335, 0.5
        %v1342 = vmul.f32 %v1306, %v933
        %v1343 = vmul.f32 %v1307, %v934
        %v1344 = vmul.f32 %v1308, %v935
        %v1345 = vmul.f32 %v1309, %v936
        %v1346 = vmul.f32 %v1310, %v937
        %v1347 = vmul.f32 %v1311, %v938
        %v1348 = vmul.f32 %v1282, %v1312
        %v1349 = vmul.f32 %v1283, %v1313
        %v1350 = vmul.f32 %v1284, %v1314
        %v1351 = vmul.f32 %v1285, %v1315
        %v1352 = vmul.f32 %v1286, %v1316
        %v1353 = vmul.f32 %v1287, %v1317
        %v1354 = vadd.f32 %v1342, %v1348
        %v1355 = vadd.f32 %v1343, %v1349
        %v1356 = vadd.f32 %v1344, %v1350
        %v1357 = vadd.f32 %v1345, %v1351
        %v1358 = vadd.f32 %v1346, %v1352
        %v1359 = vadd.f32 %v1347, %v1353
        %v1360 = vtanh.pop %v1354
        %v1361 = vtanh.pop %v1355
        %v1362 = vtanh.pop %v1356
        %v1363 = vtanh.pop %v1357
        %v1364 = vtanh.pop %v1358
        %v1365 = vtanh.pop %v1359
        %v1366 = vmul.f32 %v1336, %v1360
        %v1367 = vmul.f32 %v1337, %v1361
        %v1368 = vmul.f32 %v1338, %v1362
        %v1369 = vmul.f32 %v1339, %v1363
        %v1370 = vmul.f32 %v1340, %v1364
        %v1371 = vmul.f32 %v1341, %v1365
        %v1372 = vld [vmem:[%s9] sm:$0xff]
        %v1373 = vld [vmem:[%s9 + $0x8] sm:$0xff]
        %v1374 = vld [vmem:[%s9 + $0x10] sm:$0xff]
        %v1375 = vld [vmem:[%s9 + $0x18] sm:$0xff]
        %v1376 = vld [vmem:[%s9 + $0x20] sm:$0xff]
        %v1377 = vld [vmem:[%s9 + $0x28] sm:$0xff]
        %v1378 = vld [vmem:[%s9 + $0x30] sm:$0xff]
        %v1379 = vld [vmem:[%s9 + $0x38] sm:$0xff]
        %v1380 = vld [vmem:[%s9 + $0x40] sm:$0xff]
        %v1381 = vld [vmem:[%s9 + $0x48] sm:$0xff]
        %v1382 = vld [vmem:[%s9 + $0x50] sm:$0xff]
        %v1383 = vld [vmem:[%s9 + $0x58] sm:$0xff]
        %v1384 = vld [vmem:[%s10] sm:$0xff]
        %v1385 = vld [vmem:[%s10 + $0x8] sm:$0xff]
        %v1386 = vld [vmem:[%s10 + $0x10] sm:$0xff]
        %v1387 = vld [vmem:[%s10 + $0x18] sm:$0xff]
        %v1388 = vld [vmem:[%s10 + $0x20] sm:$0xff]
        %v1389 = vld [vmem:[%s10 + $0x28] sm:$0xff]
        %v1390 = vld [vmem:[%s10 + $0x30] sm:$0xff]
        %v1391 = vld [vmem:[%s10 + $0x38] sm:$0xff]
        %v1392 = vld [vmem:[%s10 + $0x40] sm:$0xff]
        %v1393 = vld [vmem:[%s10 + $0x48] sm:$0xff]
        %v1394 = vld [vmem:[%s10 + $0x50] sm:$0xff]
        %v1395 = vld [vmem:[%s10 + $0x58] sm:$0xff]
        %v1397 = vsel %vm963, %v1384, 0
        %v1400 = vsel %vm963, %v1385, 0
        %v1403 = vsel %vm963, %v1386, 0
        %v1406 = vsel %vm963, %v1387, 0
        %v1409 = vsel %vm963, %v1388, 0
        %v1412 = vsel %vm963, %v1389, 0
        %v1415 = vsel %vm963, %v1390, 0
        %v1418 = vsel %vm963, %v1391, 0
        %v1421 = vsel %vm963, %v1392, 0
        %v1424 = vsel %vm963, %v1393, 0
        %v1427 = vsel %vm963, %v1394, 0
        %v1430 = vsel %vm963, %v1395, 0
        %v1433 = vsel %vm1000, %v943, 0
        %v1436 = vsel %vm1000, %v944, 0
        %1438 = vmatprep.subr.mxu0 %v940
        %1439 = vmatpush1.msra.mxu0 %v939
        %1440 = vmatprep.subr.mxu0 %v942
        %1441 = vmatpush1.msra.mxu0 %v941
        %1442 = vmatprep.subr.mxu0 %v1436
        %1443 = vmatpush1.msra.mxu0 %v1433
        %1444 = vmatprep.subr.mxu0 0.0
        %1445 = vmatpush1.msra.mxu0 0.0
        %1446 = vmatprep.subr.mxu0 0.0
        %1447 = vmatpush1.msra.mxu0 0.0
        %1448 = vmatprep.subr.mxu0 0.0
        %1449 = vmatpush1.msra.mxu0 0.0
        %1450 = vmatprep.subr.mxu0 0.0
        %1451 = vmatpush1.msra.mxu0 0.0
        %1452 = vmatprep.subr.mxu0 0.0
        %1453 = vmatpush1.msra.mxu0 0.0
        %1454 = vmatprep.subr.mxu0 0.0
        %1455 = vmatpush1.msra.mxu0 0.0
        %1456 = vmatprep.subr.mxu0 0.0
        %1457 = vmatpush1.msra.mxu0 0.0
        %1458 = vmatprep.subr.mxu0 0.0
        %1459 = vmatpush1.msra.mxu0 0.0
        %1460 = vmatprep.subr.mxu0 0.0
        %1461 = vmatpush1.msra.mxu0 0.0
        %1462 = vmatprep.subr.mxu0 0.0
        %1463 = vmatpush1.msra.mxu0 0.0
        %1464 = vmatprep.subr.mxu0 0.0
        %1465 = vmatpush1.msra.mxu0 0.0
        %1466 = vmatprep.subr.mxu0 0.0
        %1467 = vmatpush1.msra.mxu0 0.0
        %1468 = vmatprep.subr.mxu0 0.0
        %1469 = vmatpush1.msra.mxu0 0.0
        %1470 = vmatprep.subr.mxu0 0.0
        %1471 = vmatpush1.msra.mxu0 0.0
        %1472 = vmatprep.subr.mxu0 0.0
        %1473 = vmatpush1.msra.mxu0 0.0
        %1474 = vmatprep.subr.mxu0 0.0
        %1475 = vmatpush1.msra.mxu0 0.0
        %1476 = vmatprep.subr.mxu0 0.0
        %1477 = vmatpush1.msra.mxu0 0.0
        %1478 = vmatprep.subr.mxu0 0.0
        %1479 = vmatpush1.msra.mxu0 0.0
        %1480 = vmatprep.subr.mxu0 0.0
        %1481 = vmatpush1.msra.mxu0 0.0
        %1482 = vmatprep.subr.mxu0 0.0
        %1483 = vmatpush1.msra.mxu0 0.0
        %1484 = vmatprep.subr.mxu0 0.0
        %1485 = vmatpush1.msra.mxu0 0.0
        %1486 = vmatprep.subr.mxu0 0.0
        %1487 = vmatpush1.msra.mxu0 0.0
        %1488 = vmatprep.subr.mxu0 0.0
        %1489 = vmatpush1.msra.mxu0 0.0
        %1490 = vmatprep.subr.mxu0 0.0
        %1491 = vmatpush1.msra.mxu0 0.0
        %1492 = vmatprep.subr.mxu0 0.0
        %1493 = vmatpush1.msra.mxu0 0.0
        %1494 = vmatprep.subr.mxu0 0.0
        %1495 = vmatpush1.msra.mxu0 0.0
        %1496 = vmatprep.subr.mxu0 0.0
        %1497 = vmatpush1.msra.mxu0 0.0
        %1498 = vmatprep.subr.mxu0 0.0
        %1499 = vmatpush1.msra.mxu0 0.0
        %1500 = vmatprep.subr.mxu0 0.0
        %1501 = vmatpush1.msra.mxu0 0.0
        %1502 = vmatprep.mubr.f32.mxu0 0.0
        %1503 = vmatmul.mubr.f32.gmra.mrb[0].mxu0 %v1397
        %v1504 = vpop.f32.mrb[0].mxu0
        %v1505 = vadd.f32 0.0, %v1504
        %v1506 = vpop.f32.mrb[0].mxu0
        %v1507 = vadd.f32 0.0, %v1506
        %1508 = vmatprep.mubr.f32.mxu0 0.0
        %1509 = vmatmul.mubr.f32.gmra.mrb[0].mxu0 %v1400
        %v1510 = vpop.f32.mrb[0].mxu0
        %v1511 = vadd.f32 0.0, %v1510
        %v1512 = vpop.f32.mrb[0].mxu0
        %v1513 = vadd.f32 0.0, %v1512
        %1514 = vmatprep.mubr.f32.mxu0 0.0
        %1515 = vmatmul.mubr.f32.gmra.mrb[0].mxu0 %v1403
        %v1516 = vpop.f32.mrb[0].mxu0
        %v1517 = vadd.f32 0.0, %v1516
        %v1518 = vpop.f32.mrb[0].mxu0
        %v1519 = vadd.f32 0.0, %v1518
        %1520 = vmatprep.mubr.f32.mxu0 0.0
        %1521 = vmatmul.mubr.f32.gmra.mrb[0].mxu0 %v1406
        %v1522 = vpop.f32.mrb[0].mxu0
        %v1523 = vadd.f32 0.0, %v1522
        %v1524 = vpop.f32.mrb[0].mxu0
        %v1525 = vadd.f32 0.0, %v1524
        %1526 = vmatprep.mubr.f32.mxu0 0.0
        %1527 = vmatmul.mubr.f32.gmra.mrb[0].mxu0 %v1409
        %v1528 = vpop.f32.mrb[0].mxu0
        %v1529 = vadd.f32 0.0, %v1528
        %v1530 = vpop.f32.mrb[0].mxu0
        %v1531 = vadd.f32 0.0, %v1530
        %1532 = vmatprep.mubr.f32.mxu0 0.0
        %1533 = vmatmul.mubr.f32.gmra.mrb[0].mxu0 %v1412
        %v1534 = vpop.f32.mrb[0].mxu0
        %v1535 = vadd.f32 0.0, %v1534
        %v1536 = vpop.f32.mrb[0].mxu0
        %v1537 = vadd.f32 0.0, %v1536
        %1538 = vmatprep.mubr.f32.mxu0 0.0
        %1539 = vmatmul.mubr.f32.gmra.mrb[0].mxu0 %v1415
        %v1540 = vpop.f32.mrb[0].mxu0
        %v1541 = vadd.f32 0.0, %v1540
        %v1542 = vpop.f32.mrb[0].mxu0
        %v1543 = vadd.f32 0.0, %v1542
        %1544 = vmatprep.mubr.f32.mxu0 0.0
        %1545 = vmatmul.mubr.f32.gmra.mrb[0].mxu0 %v1418
        %v1546 = vpop.f32.mrb[0].mxu0
        %v1547 = vadd.f32 0.0, %v1546
        %v1548 = vpop.f32.mrb[0].mxu0
        %v1549 = vadd.f32 0.0, %v1548
        %1550 = vmatprep.mubr.f32.mxu0 0.0
        %1551 = vmatmul.mubr.f32.gmra.mrb[0].mxu0 %v1421
        %v1552 = vpop.f32.mrb[0].mxu0
        %v1553 = vadd.f32 0.0, %v1552
        %v1554 = vpop.f32.mrb[0].mxu0
        %v1555 = vadd.f32 0.0, %v1554
        %1556 = vmatprep.mubr.f32.mxu0 0.0
        %1557 = vmatmul.mubr.f32.gmra.mrb[0].mxu0 %v1424
        %v1558 = vpop.f32.mrb[0].mxu0
        %v1559 = vadd.f32 0.0, %v1558
        %v1560 = vpop.f32.mrb[0].mxu0
        %v1561 = vadd.f32 0.0, %v1560
        %1562 = vmatprep.mubr.f32.mxu0 0.0
        %1563 = vmatmul.mubr.f32.gmra.mrb[0].mxu0 %v1427
        %v1564 = vpop.f32.mrb[0].mxu0
        %v1565 = vadd.f32 0.0, %v1564
        %v1566 = vpop.f32.mrb[0].mxu0
        %v1567 = vadd.f32 0.0, %v1566
        %1568 = vmatprep.mubr.f32.mxu0 0.0
        %1569 = vmatmul.mubr.f32.gmra.mrb[0].mxu0 %v1430
        %v1570 = vpop.f32.mrb[0].mxu0
        %v1571 = vadd.f32 0.0, %v1570
        %v1572 = vpop.f32.mrb[0].mxu0
        %v1573 = vadd.f32 0.0, %v1572
        %1574 = vdwg.mxu0
        %v1576 = vsel %vm963, %v1372, 0
        %v1579 = vsel %vm963, %v1373, 0
        %v1582 = vsel %vm963, %v1374, 0
        %v1585 = vsel %vm963, %v1375, 0
        %v1588 = vsel %vm963, %v1376, 0
        %v1591 = vsel %vm963, %v1377, 0
        %v1594 = vsel %vm963, %v1378, 0
        %v1597 = vsel %vm963, %v1379, 0
        %v1600 = vsel %vm963, %v1380, 0
        %v1603 = vsel %vm963, %v1381, 0
        %v1606 = vsel %vm963, %v1382, 0
        %v1609 = vsel %vm963, %v1383, 0
        %v1612 = vsel %vm1000, %v1370, 0
        %v1615 = vsel %vm1000, %v1371, 0
        %1617 = vmatprep.subr.mxu0 %v1367
        %1618 = vmatpush1.msra.mxu0 %v1366
        %1619 = vmatprep.subr.mxu0 %v1369
        %1620 = vmatpush1.msra.mxu0 %v1368
        %1621 = vmatprep.subr.mxu0 %v1615
        %1622 = vmatpush1.msra.mxu0 %v1612
        %1623 = vmatprep.subr.mxu0 0.0
        %1624 = vmatpush1.msra.mxu0 0.0
        %1625 = vmatprep.subr.mxu0 0.0
        %1626 = vmatpush1.msra.mxu0 0.0
        %1627 = vmatprep.subr.mxu0 0.0
        %1628 = vmatpush1.msra.mxu0 0.0
        %1629 = vmatprep.subr.mxu0 0.0
        %1630 = vmatpush1.msra.mxu0 0.0
        %1631 = vmatprep.subr.mxu0 0.0
        %1632 = vmatpush1.msra.mxu0 0.0
        %1633 = vmatprep.subr.mxu0 0.0
        %1634 = vmatpush1.msra.mxu0 0.0
        %1635 = vmatprep.subr.mxu0 0.0
        %1636 = vmatpush1.msra.mxu0 0.0
        %1637 = vmatprep.subr.mxu0 0.0
        %1638 = vmatpush1.msra.mxu0 0.0
        %1639 = vmatprep.subr.mxu0 0.0
        %1640 = vmatpush1.msra.mxu0 0.0
        %1641 = vmatprep.subr.mxu0 0.0
        %1642 = vmatpush1.msra.mxu0 0.0
        %1643 = vmatprep.subr.mxu0 0.0
        %1644 = vmatpush1.msra.mxu0 0.0
        %1645 = vmatprep.subr.mxu0 0.0
        %1646 = vmatpush1.msra.mxu0 0.0
        %1647 = vmatprep.subr.mxu0 0.0
        %1648 = vmatpush1.msra.mxu0 0.0
        %1649 = vmatprep.subr.mxu0 0.0
        %1650 = vmatpush1.msra.mxu0 0.0
        %1651 = vmatprep.subr.mxu0 0.0
        %1652 = vmatpush1.msra.mxu0 0.0
        %1653 = vmatprep.subr.mxu0 0.0
        %1654 = vmatpush1.msra.mxu0 0.0
        %1655 = vmatprep.subr.mxu0 0.0
        %1656 = vmatpush1.msra.mxu0 0.0
        %1657 = vmatprep.subr.mxu0 0.0
        %1658 = vmatpush1.msra.mxu0 0.0
        %1659 = vmatprep.subr.mxu0 0.0
        %1660 = vmatpush1.msra.mxu0 0.0
        %1661 = vmatprep.subr.mxu0 0.0
        %1662 = vmatpush1.msra.mxu0 0.0
        %1663 = vmatprep.subr.mxu0 0.0
        %1664 = vmatpush1.msra.mxu0 0.0
        %1665 = vmatprep.subr.mxu0 0.0
        %1666 = vmatpush1.msra.mxu0 0.0
        %1667 = vmatprep.subr.mxu0 0.0
        %1668 = vmatpush1.msra.mxu0 0.0
        %1669 = vmatprep.subr.mxu0 0.0
        %1670 = vmatpush1.msra.mxu0 0.0
        %1671 = vmatprep.subr.mxu0 0.0
        %1672 = vmatpush1.msra.mxu0 0.0
        %1673 = vmatprep.subr.mxu0 0.0
        %1674 = vmatpush1.msra.mxu0 0.0
        %1675 = vmatprep.subr.mxu0 0.0
        %1676 = vmatpush1.msra.mxu0 0.0
        %1677 = vmatprep.subr.mxu0 0.0
        %1678 = vmatpush1.msra.mxu0 0.0
        %1679 = vmatprep.subr.mxu0 0.0
        %1680 = vmatpush1.msra.mxu0 0.0
        %1681 = vmatprep.mubr.f32.mxu0 0.0
        %1682 = vmatmul.mubr.f32.gmra.mrb[0].mxu0 %v1576
        %v1683 = vpop.f32.mrb[0].mxu0
        %v1684 = vadd.f32 %v1505, %v1683
        %v1685 = vpop.f32.mrb[0].mxu0
        %v1686 = vadd.f32 %v1507, %v1685
        %1687 = vmatprep.mubr.f32.mxu0 0.0
        %1688 = vmatmul.mubr.f32.gmra.mrb[0].mxu0 %v1579
        %v1689 = vpop.f32.mrb[0].mxu0
        %v1690 = vadd.f32 %v1511, %v1689
        %v1691 = vpop.f32.mrb[0].mxu0
        %v1692 = vadd.f32 %v1513, %v1691
        %1693 = vmatprep.mubr.f32.mxu0 0.0
        %1694 = vmatmul.mubr.f32.gmra.mrb[0].mxu0 %v1582
        %v1695 = vpop.f32.mrb[0].mxu0
        %v1696 = vadd.f32 %v1517, %v1695
        %v1697 = vpop.f32.mrb[0].mxu0
        %v1698 = vadd.f32 %v1519, %v1697
        %1699 = vmatprep.mubr.f32.mxu0 0.0
        %1700 = vmatmul.mubr.f32.gmra.mrb[0].mxu0 %v1585
        %v1701 = vpop.f32.mrb[0].mxu0
        %v1702 = vadd.f32 %v1523, %v1701
        %v1703 = vpop.f32.mrb[0].mxu0
        %v1704 = vadd.f32 %v1525, %v1703
        %1705 = vmatprep.mubr.f32.mxu0 0.0
        %1706 = vmatmul.mubr.f32.gmra.mrb[0].mxu0 %v1588
        %v1707 = vpop.f32.mrb[0].mxu0
        %v1708 = vadd.f32 %v1529, %v1707
        %v1709 = vpop.f32.mrb[0].mxu0
        %v1710 = vadd.f32 %v1531, %v1709
        %1711 = vmatprep.mubr.f32.mxu0 0.0
        %1712 = vmatmul.mubr.f32.gmra.mrb[0].mxu0 %v1591
        %v1713 = vpop.f32.mrb[0].mxu0
        %v1714 = vadd.f32 %v1535, %v1713
        %v1715 = vpop.f32.mrb[0].mxu0
        %v1716 = vadd.f32 %v1537, %v1715
        %1717 = vmatprep.mubr.f32.mxu0 0.0
        %1718 = vmatmul.mubr.f32.gmra.mrb[0].mxu0 %v1594
        %v1719 = vpop.f32.mrb[0].mxu0
        %v1720 = vadd.f32 %v1541, %v1719
        %v1721 = vpop.f32.mrb[0].mxu0
        %v1722 = vadd.f32 %v1543, %v1721
        %1723 = vmatprep.mubr.f32.mxu0 0.0
        %1724 = vmatmul.mubr.f32.gmra.mrb[0].mxu0 %v1597
        %v1725 = vpop.f32.mrb[0].mxu0
        %v1726 = vadd.f32 %v1547, %v1725
        %v1727 = vpop.f32.mrb[0].mxu0
        %v1728 = vadd.f32 %v1549, %v1727
        %1729 = vmatprep.mubr.f32.mxu0 0.0
        %1730 = vmatmul.mubr.f32.gmra.mrb[0].mxu0 %v1600
        %v1731 = vpop.f32.mrb[0].mxu0
        %v1732 = vadd.f32 %v1553, %v1731
        %v1733 = vpop.f32.mrb[0].mxu0
        %v1734 = vadd.f32 %v1555, %v1733
        %1735 = vmatprep.mubr.f32.mxu0 0.0
        %1736 = vmatmul.mubr.f32.gmra.mrb[0].mxu0 %v1603
        %v1737 = vpop.f32.mrb[0].mxu0
        %v1738 = vadd.f32 %v1559, %v1737
        %v1739 = vpop.f32.mrb[0].mxu0
        %v1740 = vadd.f32 %v1561, %v1739
        %1741 = vmatprep.mubr.f32.mxu0 0.0
        %1742 = vmatmul.mubr.f32.gmra.mrb[0].mxu0 %v1606
        %v1743 = vpop.f32.mrb[0].mxu0
        %v1744 = vadd.f32 %v1565, %v1743
        %v1745 = vpop.f32.mrb[0].mxu0
        %v1746 = vadd.f32 %v1567, %v1745
        %1747 = vmatprep.mubr.f32.mxu0 0.0
        %1748 = vmatmul.mubr.f32.gmra.mrb[0].mxu0 %v1609
        %v1749 = vpop.f32.mrb[0].mxu0
        %v1750 = vadd.f32 %v1571, %v1749
        %v1751 = vpop.f32.mrb[0].mxu0
        %v1752 = vadd.f32 %v1573, %v1751
        %1753 = vdwg.mxu0
        %v1754 = vld [vmem:[%s11] sm:$0xff]
        %v1755 = vld [vmem:[%s11 + $0x8] sm:$0xff]
        %v1756 = vld [vmem:[%s11 + $0x10] sm:$0xff]
        %v1757 = vld [vmem:[%s11 + $0x18] sm:$0xff]
        %v1758 = vld [vmem:[%s11 + $0x20] sm:$0xff]
        %v1759 = vld [vmem:[%s11 + $0x28] sm:$0xff]
        %v1760 = vld [vmem:[%s11 + $0x30] sm:$0xff]
        %v1761 = vld [vmem:[%s11 + $0x38] sm:$0xff]
        %v1762 = vld [vmem:[%s11 + $0x40] sm:$0xff]
        %v1763 = vld [vmem:[%s11 + $0x48] sm:$0xff]
        %v1764 = vld [vmem:[%s11 + $0x50] sm:$0xff]
        %v1765 = vld [vmem:[%s11 + $0x58] sm:$0xff]
        %1767 = vset.pattern.permute.xlu0 0
        %1768 = vperm.xlu0 %1767, %v1754
        %v1769 = vpop.permute.xlu0 %1768
        %1772 = vset.pattern.permute.xlu0 0
        %1773 = vperm.xlu0 %1772, %v1755
        %v1774 = vpop.permute.xlu0 %1773
        %1777 = vset.pattern.permute.xlu0 0
        %1778 = vperm.xlu0 %1777, %v1756
        %v1779 = vpop.permute.xlu0 %1778
        %1782 = vset.pattern.permute.xlu0 0
        %1783 = vperm.xlu0 %1782, %v1757
        %v1784 = vpop.permute.xlu0 %1783
        %1787 = vset.pattern.permute.xlu0 0
        %1788 = vperm.xlu0 %1787, %v1758
        %v1789 = vpop.permute.xlu0 %1788
        %1792 = vset.pattern.permute.xlu0 0
        %1793 = vperm.xlu0 %1792, %v1759
        %v1794 = vpop.permute.xlu0 %1793
        %1797 = vset.pattern.permute.xlu0 0
        %1798 = vperm.xlu0 %1797, %v1760
        %v1799 = vpop.permute.xlu0 %1798
        %1802 = vset.pattern.permute.xlu0 0
        %1803 = vperm.xlu0 %1802, %v1761
        %v1804 = vpop.permute.xlu0 %1803
        %1807 = vset.pattern.permute.xlu0 0
        %1808 = vperm.xlu0 %1807, %v1762
        %v1809 = vpop.permute.xlu0 %1808
        %1812 = vset.pattern.permute.xlu0 0
        %1813 = vperm.xlu0 %1812, %v1763
        %v1814 = vpop.permute.xlu0 %1813
        %1817 = vset.pattern.permute.xlu0 0
        %1818 = vperm.xlu0 %1817, %v1764
        %v1819 = vpop.permute.xlu0 %1818
        %1822 = vset.pattern.permute.xlu0 0
        %1823 = vperm.xlu0 %1822, %v1765
        %v1824 = vpop.permute.xlu0 %1823
        %v1826 = vadd.f32 %v1684, %v1769
        %v1827 = vadd.f32 %v1686, %v1769
        %v1828 = vadd.f32 %v1690, %v1774
        %v1829 = vadd.f32 %v1692, %v1774
        %v1830 = vadd.f32 %v1696, %v1779
        %v1831 = vadd.f32 %v1698, %v1779
        %v1832 = vadd.f32 %v1702, %v1784
        %v1833 = vadd.f32 %v1704, %v1784
        %v1834 = vadd.f32 %v1708, %v1789
        %v1835 = vadd.f32 %v1710, %v1789
        %v1836 = vadd.f32 %v1714, %v1794
        %v1837 = vadd.f32 %v1716, %v1794
        %v1838 = vadd.f32 %v1720, %v1799
        %v1839 = vadd.f32 %v1722, %v1799
        %v1840 = vadd.f32 %v1726, %v1804
        %v1841 = vadd.f32 %v1728, %v1804
        %v1842 = vadd.f32 %v1732, %v1809
        %v1843 = vadd.f32 %v1734, %v1809
        %v1844 = vadd.f32 %v1738, %v1814
        %v1845 = vadd.f32 %v1740, %v1814
        %v1846 = vadd.f32 %v1744, %v1819
        %v1847 = vadd.f32 %v1746, %v1819
        %v1848 = vadd.f32 %v1750, %v1824
        %v1849 = vadd.f32 %v1752, %v1824
        %v1850 = vmul.f32 %v1826, 0.5
        %v1851 = vmul.f32 %v1827, 0.5
        %v1852 = vmul.f32 %v1828, 0.5
        %v1853 = vmul.f32 %v1829, 0.5
        %v1854 = vmul.f32 %v1830, 0.5
        %v1855 = vmul.f32 %v1831, 0.5
        %v1856 = vtanh.pop %v1850
        %v1857 = vtanh.pop %v1851
        %v1858 = vtanh.pop %v1852
        %v1859 = vtanh.pop %v1853
        %v1860 = vtanh.pop %v1854
        %v1861 = vtanh.pop %v1855
        %v1862 = vmul.f32 %v1856, 0.5
        %v1863 = vmul.f32 %v1857, 0.5
        %v1864 = vmul.f32 %v1858, 0.5
        %v1865 = vmul.f32 %v1859, 0.5
        %v1866 = vmul.f32 %v1860, 0.5
        %v1867 = vmul.f32 %v1861, 0.5
        %v1868 = vadd.f32 %v1862, 0.5
        %v1869 = vadd.f32 %v1863, 0.5
        %v1870 = vadd.f32 %v1864, 0.5
        %v1871 = vadd.f32 %v1865, 0.5
        %v1872 = vadd.f32 %v1866, 0.5
        %v1873 = vadd.f32 %v1867, 0.5
        %v1874 = vmul.f32 %v1832, 0.5
        %v1875 = vmul.f32 %v1833, 0.5
        %v1876 = vmul.f32 %v1834, 0.5
        %v1877 = vmul.f32 %v1835, 0.5
        %v1878 = vmul.f32 %v1836, 0.5
        %v1879 = vmul.f32 %v1837, 0.5
        %v1880 = vtanh.pop %v1874
        %v1881 = vtanh.pop %v1875
        %v1882 = vtanh.pop %v1876
        %v1883 = vtanh.pop %v1877
        %v1884 = vtanh.pop %v1878
        %v1885 = vtanh.pop %v1879
        %v1886 = vmul.f32 %v1880, 0.5
        %v1887 = vmul.f32 %v1881, 0.5
        %v1888 = vmul.f32 %v1882, 0.5
        %v1889 = vmul.f32 %v1883, 0.5
        %v1890 = vmul.f32 %v1884, 0.5
        %v1891 = vmul.f32 %v1885, 0.5
        %v1892 = vadd.f32 %v1886, 0.5
        %v1893 = vadd.f32 %v1887, 0.5
        %v1894 = vadd.f32 %v1888, 0.5
        %v1895 = vadd.f32 %v1889, 0.5
        %v1896 = vadd.f32 %v1890, 0.5
        %v1897 = vadd.f32 %v1891, 0.5
        %v1898 = vtanh.pop %v1838
        %v1899 = vtanh.pop %v1839
        %v1900 = vtanh.pop %v1840
        %v1901 = vtanh.pop %v1841
        %v1902 = vtanh.pop %v1842
        %v1903 = vtanh.pop %v1843
        %v1904 = vmul.f32 %v1844, 0.5
        %v1905 = vmul.f32 %v1845, 0.5
        %v1906 = vmul.f32 %v1846, 0.5
        %v1907 = vmul.f32 %v1847, 0.5
        %v1908 = vmul.f32 %v1848, 0.5
        %v1909 = vmul.f32 %v1849, 0.5
        %v1910 = vtanh.pop %v1904
        %v1911 = vtanh.pop %v1905
        %v1912 = vtanh.pop %v1906
        %v1913 = vtanh.pop %v1907
        %v1914 = vtanh.pop %v1908
        %v1915 = vtanh.pop %v1909
        %v1916 = vmul.f32 %v1910, 0.5
        %v1917 = vmul.f32 %v1911, 0.5
        %v1918 = vmul.f32 %v1912, 0.5
        %v1919 = vmul.f32 %v1913, 0.5
        %v1920 = vmul.f32 %v1914, 0.5
        %v1921 = vmul.f32 %v1915, 0.5
        %v1922 = vadd.f32 %v1916, 0.5
        %v1923 = vadd.f32 %v1917, 0.5
        %v1924 = vadd.f32 %v1918, 0.5
        %v1925 = vadd.f32 %v1919, 0.5
        %v1926 = vadd.f32 %v1920, 0.5
        %v1927 = vadd.f32 %v1921, 0.5
        %v1928 = vmul.f32 %v1892, %v945
        %v1929 = vmul.f32 %v1893, %v946
        %v1930 = vmul.f32 %v1894, %v947
        %v1931 = vmul.f32 %v1895, %v948
        %v1932 = vmul.f32 %v1896, %v949
        %v1933 = vmul.f32 %v1897, %v950
        %v1934 = vmul.f32 %v1868, %v1898
        %v1935 = vmul.f32 %v1869, %v1899
        %v1936 = vmul.f32 %v1870, %v1900
        %v1937 = vmul.f32 %v1871, %v1901
        %v1938 = vmul.f32 %v1872, %v1902
        %v1939 = vmul.f32 %v1873, %v1903
        %v1940 = vadd.f32 %v1928, %v1934
        %v1941 = vadd.f32 %v1929, %v1935
        %v1942 = vadd.f32 %v1930, %v1936
        %v1943 = vadd.f32 %v1931, %v1937
        %v1944 = vadd.f32 %v1932, %v1938
        %v1945 = vadd.f32 %v1933, %v1939
        %v1946 = vtanh.pop %v1940
        %v1947 = vtanh.pop %v1941
        %v1948 = vtanh.pop %v1942
        %v1949 = vtanh.pop %v1943
        %v1950 = vtanh.pop %v1944
        %v1951 = vtanh.pop %v1945
        %v1952 = vmul.f32 %v1922, %v1946
        %v1953 = vmul.f32 %v1923, %v1947
        %v1954 = vmul.f32 %v1924, %v1948
        %v1955 = vmul.f32 %v1925, %v1949
        %v1956 = vmul.f32 %v1926, %v1950
        %v1957 = vmul.f32 %v1927, %v1951
        %v1958 = vld [vmem:[%s12] sm:$0xff]
        %v1959 = vld [vmem:[%s12 + $0x8] sm:$0xff]
        %v1960 = vld [vmem:[%s12 + $0x10] sm:$0xf]
        %1962 = vset.pattern.permute.xlu0 0
        %1963 = vperm.xlu0 %1962, %v1958
        %v1964 = vpop.permute.xlu0 %1963
        %1967 = vset.pattern.permute.xlu0 0
        %1968 = vperm.xlu0 %1967, %v1959
        %v1969 = vpop.permute.xlu0 %1968
        %1972 = vset.pattern.permute.xlu0 0
        %1973 = vperm.xlu0 %1972, %v1960
        %v1974 = vpop.permute.xlu0 %1973
        %v1976 = vmul.f32 %v1952, %v1964
        %v1977 = vmul.f32 %v1953, %v1964
        %v1978 = vmul.f32 %v1954, %v1969
        %v1979 = vmul.f32 %v1955, %v1969
        %v1980 = vmul.f32 %v1956, %v1974
        %v1981 = vmul.f32 %v1957, %v1974
        %v1982 = vadd.f32 %v1976, %v1978
        %v1983 = vsel %vm1000, %v1980, 0.0
        %v1984 = vadd.f32 %v1982, %v1983
        %v1985 = vrot.slane %v1984, 4
        %v1986 = vadd.f32 %v1984, %v1985
        %v1987 = vrot.slane %v1986, 2
        %v1988 = vadd.f32 %v1986, %v1987
        %v1989 = vrot.slane %v1988, 1
        %v1990 = vadd.f32 %v1988, %v1989
        %v1991 = vadd.f32 %v1977, %v1979
        %v1992 = vsel %vm1000, %v1981, 0.0
        %v1993 = vadd.f32 %v1991, %v1992
        %v1994 = vrot.slane %v1993, 4
        %v1995 = vadd.f32 %v1993, %v1994
        %v1996 = vrot.slane %v1995, 2
        %v1997 = vadd.f32 %v1995, %v1996
        %v1998 = vrot.slane %v1997, 1
        %v1999 = vadd.f32 %v1997, %v1998
        %v2000 = vld [vmem:[#allocation2] sm:$0x1]
        %2002 = vset.pattern.permute.xlu0 0
        %2003 = vperm.xlu0 %2002, %v2000
        %v2004 = vpop.permute.xlu0 %2003
        %v2006 = vlaneseq
        %v2007 = vshrl.u32 %v2006, 7
        %v2008 = vsub.s32 0, %v2007
        %v2009 = vrot.slane %v2004, %v2008
        %v2010 = vadd.f32 %v1990, %v2009
        %v2011 = vadd.f32 %v1999, %v2009
        %v2014 = vcombine.low %v2010, %v2011
        %v2016 = vunpack.c.l.s4 1966171168
        %v2017 = vunpack.c.0.s8 %v2016
        %v2018 = vlaneseq
        %v2019 = vshrl.u32 %v2018, 7
        %v2020 = vsub.s32 %v2017, %v2019
        %v2021 = vrot.slane %v2014, %v2020
        %v2023 = vunpack.c.l.s4 1966171168
        %v2024 = vunpack.c.0.s8 %v2023
        %v2025 = vlaneseq
        %v2026 = vshrl.u32 %v2025, 7
        %v2027 = vsub.s32 %v2024, %v2026
        %v2028 = vrot.slane %v2021, %v2027
        %v2030 = vlaneseq
        %vm2031 = vcmp.ge.s32.totalorder %v2030, 0
        %vm2032 = vcmp.lt.s32.totalorder %v2030, 256
        %vm2033 = vmand %vm2031, %vm2032
        %2034 = vst.msk [vmem:[%s776] sm:$0x3] %vm2033, %v2028
        %2035 = vst [vmem:[%s783] sm:$0xff] %v1366
        %2036 = vst [vmem:[%s783 + $0x8] sm:$0xff] %v1367
        %2037 = vst [vmem:[%s783 + $0x10] sm:$0xff] %v1368
        %2038 = vst [vmem:[%s783 + $0x18] sm:$0xff] %v1369
        %2039 = vst [vmem:[%s783 + $0x20] sm:$0xf] %v1370
        %2040 = vst [vmem:[%s783 + $0x28] sm:$0xf] %v1371
        %2041 = vst [vmem:[%s790] sm:$0xff] %v1354
        %2042 = vst [vmem:[%s790 + $0x8] sm:$0xff] %v1355
        %2043 = vst [vmem:[%s790 + $0x10] sm:$0xff] %v1356
        %2044 = vst [vmem:[%s790 + $0x18] sm:$0xff] %v1357
        %2045 = vst [vmem:[%s790 + $0x20] sm:$0xf] %v1358
        %2046 = vst [vmem:[%s790 + $0x28] sm:$0xf] %v1359
        %2047 = vst [vmem:[%s797] sm:$0xff] %v1952
        %2048 = vst [vmem:[%s797 + $0x8] sm:$0xff] %v1953
        %2049 = vst [vmem:[%s797 + $0x10] sm:$0xff] %v1954
        %2050 = vst [vmem:[%s797 + $0x18] sm:$0xff] %v1955
        %2051 = vst [vmem:[%s797 + $0x20] sm:$0xf] %v1956
        %2052 = vst [vmem:[%s797 + $0x28] sm:$0xf] %v1957
        %2053 = vst [vmem:[%s804] sm:$0xff] %v1940
        %2054 = vst [vmem:[%s804 + $0x8] sm:$0xff] %v1941
        %2055 = vst [vmem:[%s804 + $0x10] sm:$0xff] %v1942
        %2056 = vst [vmem:[%s804 + $0x18] sm:$0xff] %v1943
        %2057 = vst [vmem:[%s804 + $0x20] sm:$0xf] %v1944
        %2058 = vst [vmem:[%s804 + $0x28] sm:$0xf] %v1945
        %s2059 = sand.u32 %s368, 1
        %s2060 = scalar_lea.sflag [#allocation8], %s2059
        %s2061 = sand.u32 %s368, 1
        %s2062 = smul.addr %s2061, 2
        %s2063 = scalar_lea.vmem [#allocation7], %s2062
        %s2064 = sand.u32 %s41, 1
        %s2065 = scalar_lea.sflag [#allocation10], %s2064
        %s2066 = sand.u32 %s394, 1
        %s2067 = smul.addr %s2066, 48
        %s2068 = scalar_lea.vmem [#allocation9], %s2067
        %s2069 = sand.u32 %s41, 1
        %s2070 = scalar_lea.sflag [#allocation10], %s2069
        %s2071 = sand.u32 %s420, 1
        %s2072 = smul.addr %s2071, 48
        %s2073 = scalar_lea.vmem [#allocation11], %s2072
        %s2074 = sand.u32 %s41, 1
        %s2075 = scalar_lea.sflag [#allocation13], %s2074
        %s2076 = sand.u32 %s446, 1
        %s2077 = smul.addr %s2076, 48
        %s2078 = scalar_lea.vmem [#allocation12], %s2077
        %s2079 = sand.u32 %s41, 1
        %s2080 = scalar_lea.sflag [#allocation13], %s2079
        %s2081 = sand.u32 %s472, 1
        %s2082 = smul.addr %s2081, 48
        %s2083 = scalar_lea.vmem [#allocation14], %s2082
        // Predicated region
        $region169: #{tpu_custom_call.1} parent=151 // pred_check
          %p2084 = pneg %p378
        $region170: #{tpu_custom_call.1} parent=151 // pred_check_branch
          %2086 = sbr.rel (%p2084) target = $region172
        $region171: #{tpu_custom_call.1} parent=151 // pred_region
          %s2087 = smul.u32 2, %s41
          %s2089 = ssub.s32 32, 32
          %2090 = vsyncadd %s2060, %s2089
          %s2091 = smul.addr %s2087, 16
          %s2092 = scalar_lea.hbm %s14, %s2091
          %s2094 = sshll.u32 %s2063, 4
          %s2095 = int_to_ptr.vmem [resolvable:$true] %s2094
          %2097 = dma.vmem_to_hbm [thread:$0]  %s2095, 32, %s2092, %s2060
        $region172: #{tpu_custom_call.1} parent=151 // pred_fallthru
          _
        // Predicated region
        $region173: #{tpu_custom_call.1} parent=151 // pred_check
          %p2098 = pneg %p404
        $region174: #{tpu_custom_call.1} parent=151 // pred_check_branch
          %2100 = sbr.rel (%p2098) target = $region176
        $region175: #{tpu_custom_call.1} parent=151 // pred_region
          %s2101 = smul.u32 2, %s41
          %s2103 = ssub.s32 768, 768
          %2104 = vsyncadd %s2065, %s2103
          %s2105 = smul.addr %s2101, 128
          %s2106 = scalar_lea.hbm %s15, %s2105
          %s2107 = sshll.u32 %s2068, 4
          %s2108 = int_to_ptr.vmem [resolvable:$true] %s2107
          %2113 = dma.vmem_to_hbm [thread:$0]  %s2108, 768, %s2106, %s2065, 256, 512, 16
        $region176: #{tpu_custom_call.1} parent=151 // pred_fallthru
          _
        // Predicated region
        $region177: #{tpu_custom_call.1} parent=151 // pred_check
          %p2114 = pneg %p430
        $region178: #{tpu_custom_call.1} parent=151 // pred_check_branch
          %2116 = sbr.rel (%p2114) target = $region180
        $region179: #{tpu_custom_call.1} parent=151 // pred_region
          %s2117 = smul.u32 2, %s41
          %s2119 = ssub.s32 768, 768
          %2120 = vsyncadd %s2070, %s2119
          %s2121 = smul.addr %s2117, 128
          %s2122 = scalar_lea.hbm %s16, %s2121
          %s2123 = sshll.u32 %s2073, 4
          %s2124 = int_to_ptr.vmem [resolvable:$true] %s2123
          %2129 = dma.vmem_to_hbm [thread:$0]  %s2124, 768, %s2122, %s2070, 256, 512, 16
        $region180: #{tpu_custom_call.1} parent=151 // pred_fallthru
          _
        // Predicated region
        $region181: #{tpu_custom_call.1} parent=151 // pred_check
          %p2130 = pneg %p456
        $region182: #{tpu_custom_call.1} parent=151 // pred_check_branch
          %2132 = sbr.rel (%p2130) target = $region184
        $region183: #{tpu_custom_call.1} parent=151 // pred_region
          %s2133 = smul.u32 2, %s41
          %s2135 = ssub.s32 768, 768
          %2136 = vsyncadd %s2075, %s2135
          %s2137 = smul.addr %s2133, 128
          %s2138 = scalar_lea.hbm %s17, %s2137
          %s2139 = sshll.u32 %s2078, 4
          %s2140 = int_to_ptr.vmem [resolvable:$true] %s2139
          %2145 = dma.vmem_to_hbm [thread:$0]  %s2140, 768, %s2138, %s2075, 256, 512, 16
        $region184: #{tpu_custom_call.1} parent=151 // pred_fallthru
          _
        // Predicated region
        $region185: #{tpu_custom_call.1} parent=151 // pred_check
          %p2146 = pneg %p482
        $region186: #{tpu_custom_call.1} parent=151 // pred_check_branch
          %2148 = sbr.rel (%p2146) target = $region188
        $region187: #{tpu_custom_call.1} parent=151 // pred_region
          %s2149 = smul.u32 2, %s41
          %s2151 = ssub.s32 768, 768
          %2152 = vsyncadd %s2080, %s2151
          %s2153 = smul.addr %s2149, 128
          %s2154 = scalar_lea.hbm %s18, %s2153
          %s2155 = sshll.u32 %s2083, 4
          %s2156 = int_to_ptr.vmem [resolvable:$true] %s2155
          %2161 = dma.vmem_to_hbm [thread:$0]  %s2156, 768, %s2154, %s2080, 256, 512, 16
        $region188: #{tpu_custom_call.1} parent=151 // pred_fallthru
          _
      $region152: #{tpu_custom_call.1} parent=5 // pred_fallthru
        _
      %p2162 = scmp.le.s32.totalorder 2, %s36
      // Predicated region
      $region189: #{tpu_custom_call.1} parent=5 // pred_check
        %p2163 = pneg %p2162
      $region190: #{tpu_custom_call.1} parent=5 // pred_check_branch
        %2165 = sbr.rel (%p2163) target = $region192
      $region191: #{tpu_custom_call.1} parent=5 // pred_region
        %s2166 = ssub.s32 %s36, 2
        // Predicated region
        $region193: #{tpu_custom_call.1} parent=191 // pred_check
          %p2167 = pneg %p384
        $region194: #{tpu_custom_call.1} parent=191 // pred_check_branch
          %2169 = sbr.rel (%p2167) target = $region196
        $region195: #{tpu_custom_call.1} parent=191 // pred_region
          %s2170 = sand.u32 %s369, 1
          %s2171 = scalar_lea.sflag [#allocation8], %s2170
          %s2172 = sand.u32 %s369, 1
          %s2173 = smul.addr %s2172, 2
          %s2174 = scalar_lea.vmem [#allocation7], %s2173
          %2175 = dma.done %s2171, 32
        $region196: #{tpu_custom_call.1} parent=191 // pred_fallthru
          _
        // Predicated region
        $region197: #{tpu_custom_call.1} parent=191 // pred_check
          %p2176 = pneg %p410
        $region198: #{tpu_custom_call.1} parent=191 // pred_check_branch
          %2178 = sbr.rel (%p2176) target = $region200
        $region199: #{tpu_custom_call.1} parent=191 // pred_region
          %s2179 = sand.u32 %s42, 1
          %s2180 = scalar_lea.sflag [#allocation10], %s2179
          %s2181 = sand.u32 %s395, 1
          %s2182 = smul.addr %s2181, 48
          %s2183 = scalar_lea.vmem [#allocation9], %s2182
          %2184 = dma.done %s2180, 768
        $region200: #{tpu_custom_call.1} parent=191 // pred_fallthru
          _
        // Predicated region
        $region201: #{tpu_custom_call.1} parent=191 // pred_check
          %p2185 = pneg %p436
        $region202: #{tpu_custom_call.1} parent=191 // pred_check_branch
          %2187 = sbr.rel (%p2185) target = $region204
        $region203: #{tpu_custom_call.1} parent=191 // pred_region
          %s2188 = sand.u32 %s42, 1
          %s2189 = scalar_lea.sflag [#allocation10], %s2188
          %s2190 = sand.u32 %s421, 1
          %s2191 = smul.addr %s2190, 48
          %s2192 = scalar_lea.vmem [#allocation11], %s2191
          %2193 = dma.done %s2189, 768
        $region204: #{tpu_custom_call.1} parent=191 // pred_fallthru
          _
        // Predicated region
        $region205: #{tpu_custom_call.1} parent=191 // pred_check
          %p2194 = pneg %p462
        $region206: #{tpu_custom_call.1} parent=191 // pred_check_branch
          %2196 = sbr.rel (%p2194) target = $region208
        $region207: #{tpu_custom_call.1} parent=191 // pred_region
          %s2197 = sand.u32 %s42, 1
          %s2198 = scalar_lea.sflag [#allocation13], %s2197
          %s2199 = sand.u32 %s447, 1
          %s2200 = smul.addr %s2199, 48
          %s2201 = scalar_lea.vmem [#allocation12], %s2200
          %2202 = dma.done %s2198, 768
        $region208: #{tpu_custom_call.1} parent=191 // pred_fallthru
          _
        // Predicated region
        $region209: #{tpu_custom_call.1} parent=191 // pred_check
          %p2203 = pneg %p488
        $region210: #{tpu_custom_call.1} parent=191 // pred_check_branch
          %2205 = sbr.rel (%p2203) target = $region212
        $region211: #{tpu_custom_call.1} parent=191 // pred_region
          %s2206 = sand.u32 %s42, 1
          %s2207 = scalar_lea.sflag [#allocation13], %s2206
          %s2208 = sand.u32 %s473, 1
          %s2209 = smul.addr %s2208, 48
          %s2210 = scalar_lea.vmem [#allocation14], %s2209
          %2211 = dma.done %s2207, 768
        $region212: #{tpu_custom_call.1} parent=191 // pred_fallthru
          _
      $region192: #{tpu_custom_call.1} parent=5 // pred_fallthru
        _
    $region6: #{tpu_custom_call.1} parent=1 // loop_footer
      %s40 = sadd.s32 1, %s36
    $region7: #{tpu_custom_call.1} parent=1 // loop_footer_branch
      %35 = sbr.rel target = $region3
    $region8: #{tpu_custom_call.1} parent=1 // loop_exit
      _
    %2212 = vsyncpa [#allocation8], 1
    %s2213 = scalar_lea.sflag [#allocation8], 1
    %2214 = vsyncpa %s2213, 1
    %2215 = vsyncpa [#allocation10], 1
    %s2216 = scalar_lea.sflag [#allocation10], 1
    %2217 = vsyncpa %s2216, 1
    %2218 = vsyncpa [#allocation13], 1
    %s2219 = scalar_lea.sflag [#allocation13], 1
    %2220 = vsyncpa %s2219, 1

</llo_original>
